<compile_context>
chip_gen: v6e
topology: v6e:2x2x1
jax: 0.10.0
libtpu: 0.0.40
codegen_flags: <defaults>
</compile_context>

<pallas_src>
import jax
import jax.numpy as jnp
from jax.experimental import pallas as pl
from jax.experimental.pallas import tpu as pltpu

# ------------------------- model hyper-parameters -------------------------
C_IN = 4       # input channels
H = 16         # spatial height
W = 16         # spatial width
KSIZE = 3      # conv kernel
HID = 32       # conv output channels / hidden width
EMB = 16       # embedding dimension
HW = H * W
CKK = C_IN * KSIZE * KSIZE

# Batch-tile (images per grid step).  Sized against v7x's 64 MiB VMEM
# (32 MiB scoped default): double-buffered bf16 patch blocks of
# (TB*256, 36 -> 128 lanes) plus the f32 conv intermediate stay well under it.
TB_MAX = 32


# ------------------------------ Pallas kernel ------------------------------
def _embed_kernel(p_ref, wc_ref, bc_ref, wf_ref, bf_ref, out_ref):
    """One batch tile (TB images) per grid step.

    p_ref  : (TB*H*W, C*K*K) bf16  im2col patches, images stacked along rows
    wc_ref : (C*K*K, HID)    bf16  conv weight (c-major, then kh, kw)
    bc_ref : (1, HID)        f32   conv bias
    wf_ref : (HID, EMB)      f32   fc weight with 1/(H*W) pool scale folded in
    bf_ref : (1, EMB)        f32   fc bias
    out_ref: (TB, EMB)       f32   embeddings for this tile
    """
    tb = out_ref.shape[0]
    hw = p_ref.shape[0] // tb

    # 3x3 conv for all TB images as one big MXU matmul, f32 accumulation.
    conv = jnp.dot(p_ref[...], wc_ref[...],
                   preferred_element_type=jnp.float32)          # (TB*HW, HID)
    conv = jnp.maximum(conv + bc_ref[...], 0.0)                 # bias + ReLU (f32 VPU)

    # Global average pool: the 1/HW scale lives in wf, so this is a plain sum.
    pooled = jnp.sum(conv.reshape(tb, hw, HID), axis=1)         # (TB, HID)

    # Final linear projection for the whole tile.
    emb = jnp.dot(pooled, wf_ref[...],
                  preferred_element_type=jnp.float32) + bf_ref[...]
    out_ref[...] = emb.astype(out_ref.dtype)


# ------------------------------ host-side glue ------------------------------
def _im2col(x, k=KSIZE, pad=1):
    """NCHW -> (N, H*W, C*k*k) patches, channel-major then (kh, kw) ordering
    (matches a PyTorch Conv2d weight of shape (Cout, C, kh, kw) flattened)."""
    n, c, h, w = x.shape
    xp = jnp.pad(x, ((0, 0), (0, 0), (pad, pad), (pad, pad)))
    cols = []
    for i in range(k):
        for j in range(k):
            cols.append(xp[:, :, i:i + h, j:j + w])              # (N, C, H, W)
    patches = jnp.stack(cols, axis=2)                            # (N, C, k*k, H, W)
    patches = patches.reshape(n, c * k * k, h * w)
    return jnp.transpose(patches, (0, 2, 1))                     # (N, H*W, C*k*k)


def embed(x, params):
    """Run the embedding net on an NCHW batch via one Pallas kernel."""
    wc, bc, wf, bf = params
    n = x.shape[0]

    tb = min(TB_MAX, n)
    n_pad = pl.cdiv(n, tb) * tb

    # bf16 staging for the big operands (MXU-native); accumulate in f32.
    patches = _im2col(x.astype(jnp.bfloat16))                    # (N, HW, CKK)
    if n_pad != n:
        patches = jnp.pad(patches, ((0, n_pad - n), (0, 0), (0, 0)))
    patches = patches.reshape(n_pad * HW, CKK)

    wc_b = wc.astype(jnp.bfloat16)
    wf_s = (wf * (1.0 / HW)).astype(jnp.float32)  # fold avg-pool scale into fc

    flops = 2 * n_pad * HW * CKK * HID + 2 * n_pad * HID * EMB
    bytes_accessed = (patches.size * 2 + wc_b.size * 2 +
                      (bc.size + wf_s.size + bf.size + n_pad * EMB) * 4)

    out = pl.pallas_call(
        _embed_kernel,
        out_shape=jax.ShapeDtypeStruct((n_pad, EMB), jnp.float32),
        grid_spec=pltpu.PrefetchScalarGridSpec(
            num_scalar_prefetch=0,
            grid=(n_pad // tb,),
            in_specs=[
                pl.BlockSpec((tb * HW, CKK), lambda b: (b, 0)),
                pl.BlockSpec((CKK, HID), lambda b: (0, 0)),
                pl.BlockSpec((1, HID), lambda b: (0, 0)),
                pl.BlockSpec((HID, EMB), lambda b: (0, 0)),
                pl.BlockSpec((1, EMB), lambda b: (0, 0)),
            ],
            out_specs=pl.BlockSpec((tb, EMB), lambda b: (b, 0)),
        ),
        compiler_params=pltpu.CompilerParams(
            dimension_semantics=("parallel",)),
        cost_estimate=pl.CostEstimate(
            flops=flops, transcendentals=0, bytes_accessed=bytes_accessed),
    )(patches, wc_b, bc, wf_s, bf)
    return out[:n]


def triplet_net_forward(x1, x2, x3, params):
    """TripletNet.forward: shared embedding net on x1, x2, x3, fused into one
    pallas_call over the concatenated batch."""
    n1, n2, n3 = x1.shape[0], x2.shape[0], x3.shape[0]
    emb = embed(jnp.concatenate([x1, x2, x3], axis=0), params)
    return emb[:n1], emb[n1:n1 + n2], emb[n1 + n2:n1 + n2 + n3]


def get_embedding(x, params):
    """TripletNet.get_embedding."""
    return embed(x, params)


def init_params(key):
    k1, k2, k3, k4 = jax.random.split(key, 4)
    # PyTorch conv weight (HID, C, kh, kw) flattened & transposed to (CKK, HID)
    wc = (jax.random.normal(k1, (HID, CKK), jnp.float32) * 0.05).T
    bc = jax.random.normal(k2, (1, HID), jnp.float32) * 0.01
    wf = jax.random.normal(k3, (HID, EMB), jnp.float32) * 0.1
    bf = jax.random.normal(k4, (1, EMB), jnp.float32) * 0.01
    return wc, bc, wf, bf


def _embed_ref(x, params):
    """Pure-JAX f32 reference of the embedding net (sanity check only)."""
    wc, bc, wf, bf = params
    p = _im2col(x.astype(jnp.float32))                           # (N, HW, CKK)
    conv = jnp.maximum(jnp.einsum('npk,kh->nph', p, wc) + bc, 0.0)
    return jnp.mean(conv, axis=1) @ wf + bf


if __name__ == "__main__":
    key = jax.random.PRNGKey(0)
    kp, k1, k2, k3 = jax.random.split(key, 4)
    params = init_params(kp)

    batch = 2
    x1 = jax.random.normal(k1, (batch, C_IN, H, W), jnp.float32)
    x2 = jax.random.normal(k2, (batch, C_IN, H, W), jnp.float32)
    x3 = jax.random.normal(k3, (batch, C_IN, H, W), jnp.float32)

    fwd = jax.jit(triplet_net_forward)
    o1, o2, o3 = fwd(x1, x2, x3, params)
    jax.block_until_ready((o1, o2, o3))

    assert o1.shape == (batch, EMB)
    assert o2.shape == (batch, EMB)
    assert o3.shape == (batch, EMB)

    # Loose numerical check vs f32 reference (kernel stages big operands as bf16).
    ref = jnp.concatenate([_embed_ref(x, params) for x in (x1, x2, x3)], axis=0)
    got = jnp.concatenate([o1, o2, o3], axis=0)
    max_err = float(jnp.max(jnp.abs(got - ref)))
    assert max_err < 5e-2, f"max abs err {max_err}"

    print("KERNEL_OK")
</pallas_src>

<mosaic_0001>
module attributes {stable_mosaic.version = 11 : i64} {
  func.func @_embed_kernel(%arg0: i32, %arg1: memref<1536x36xbf16, #tpu.memory_space<vmem>>, %arg2: memref<36x32xbf16, #tpu.memory_space<vmem>>, %arg3: memref<1x32xf32, #tpu.memory_space<vmem>>, %arg4: memref<32x16xf32, #tpu.memory_space<vmem>>, %arg5: memref<1x16xf32, #tpu.memory_space<vmem>>, %arg6: memref<6x16xf32, #tpu.memory_space<vmem>>) attributes {dimension_semantics = [#tpu.dimension_semantics<parallel>], iteration_bounds = array<i64: 1>, scalar_prefetch = 0 : i64, scratch_operands = 0 : i64, tpu.core_type = #tpu.core_type<tc>, window_params = [{transform_indices = @transform_0, window_bounds = array<i64: 1536, 36>}, {pipeline_mode = #tpu.pipeline_mode<synchronous>, transform_indices = @transform_1, window_bounds = array<i64: 36, 32>}, {pipeline_mode = #tpu.pipeline_mode<synchronous>, transform_indices = @transform_2, window_bounds = array<i64: 1, 32>}, {pipeline_mode = #tpu.pipeline_mode<synchronous>, transform_indices = @transform_3, window_bounds = array<i64: 32, 16>}, {pipeline_mode = #tpu.pipeline_mode<synchronous>, transform_indices = @transform_4, window_bounds = array<i64: 1, 16>}, {transform_indices = @transform_5, window_bounds = array<i64: 6, 16>}]} {
    %c0 = arith.constant 0 : index
    %c0_0 = arith.constant 0 : index
    %0 = vector.load %arg1[%c0, %c0_0] : memref<1536x36xbf16, #tpu.memory_space<vmem>>, vector<1536x36xbf16>
    %c0_1 = arith.constant 0 : index
    %c0_2 = arith.constant 0 : index
    %1 = vector.load %arg2[%c0_1, %c0_2] : memref<36x32xbf16, #tpu.memory_space<vmem>>, vector<36x32xbf16>
    %cst = arith.constant dense<0.000000e+00> : vector<1536x32xf32>
    %2 = tpu.matmul %0, %1, %cst {dimension_numbers = #tpu.dot_dimension_numbers<[1], [0], [0], [1], [0, 0, 1, 1], [], []>} : vector<1536x36xbf16>, vector<36x32xbf16>, vector<1536x32xf32> -> vector<1536x32xf32>
    %c0_3 = arith.constant 0 : index
    %c0_4 = arith.constant 0 : index
    %3 = vector.load %arg3[%c0_3, %c0_4] : memref<1x32xf32, #tpu.memory_space<vmem>>, vector<1x32xf32>
    %4 = vector.broadcast %3 : vector<1x32xf32> to vector<1536x32xf32>
    %5 = arith.addf %2, %4 : vector<1536x32xf32>
    %cst_5 = arith.constant 0.000000e+00 : f32
    %6 = vector.broadcast %cst_5 : f32 to vector<1536x32xf32>
    %7 = arith.maximumf %5, %6 : vector<1536x32xf32>
    %8 = vector.shape_cast %7 : vector<1536x32xf32> to vector<6x256x32xf32>
    %cst_6 = arith.constant dense<0.000000e+00> : vector<6x32xf32>
    %9 = vector.multi_reduction <add>, %8, %cst_6 [1] : vector<6x256x32xf32> to vector<6x32xf32>
    %c0_7 = arith.constant 0 : index
    %c0_8 = arith.constant 0 : index
    %10 = vector.load %arg4[%c0_7, %c0_8] : memref<32x16xf32, #tpu.memory_space<vmem>>, vector<32x16xf32>
    %cst_9 = arith.constant dense<0.000000e+00> : vector<6x16xf32>
    %11 = tpu.matmul %9, %10, %cst_9 {dimension_numbers = #tpu.dot_dimension_numbers<[1], [0], [0], [1], [0, 0, 1, 1], [], []>} : vector<6x32xf32>, vector<32x16xf32>, vector<6x16xf32> -> vector<6x16xf32>
    %c0_10 = arith.constant 0 : index
    %c0_11 = arith.constant 0 : index
    %12 = vector.load %arg5[%c0_10, %c0_11] : memref<1x16xf32, #tpu.memory_space<vmem>>, vector<1x16xf32>
    %13 = vector.broadcast %12 : vector<1x16xf32> to vector<6x16xf32>
    %14 = arith.addf %11, %13 : vector<6x16xf32>
    %c0_12 = arith.constant 0 : index
    %c0_13 = arith.constant 0 : index
    %15 = vector.load %arg6[%c0_12, %c0_13] : memref<6x16xf32, #tpu.memory_space<vmem>>, vector<6x16xf32>
    tpu.vector_store %arg6[%c0_12, %c0_13], %14 {strides = array<i32>} : memref<6x16xf32, #tpu.memory_space<vmem>>, vector<6x16xf32>,
    return
  }
  func.func @transform_0(%arg0: i32) -> (i32, i32) {
    %c0_i32 = arith.constant 0 : i32
    %c0_i32_0 = arith.constant 0 : i32
    return %arg0, %c0_i32 : i32, i32
  }
  func.func @transform_1(%arg0: i32) -> (i32, i32) {
    %c0_i32 = arith.constant 0 : i32
    %c0_i32_0 = arith.constant 0 : i32
    %c0_i32_1 = arith.constant 0 : i32
    return %c0_i32, %c0_i32_0 : i32, i32
  }
  func.func @transform_2(%arg0: i32) -> (i32, i32) {
    %c0_i32 = arith.constant 0 : i32
    %c0_i32_0 = arith.constant 0 : i32
    %c0_i32_1 = arith.constant 0 : i32
    return %c0_i32, %c0_i32_0 : i32, i32
  }
  func.func @transform_3(%arg0: i32) -> (i32, i32) {
    %c0_i32 = arith.constant 0 : i32
    %c0_i32_0 = arith.constant 0 : i32
    %c0_i32_1 = arith.constant 0 : i32
    return %c0_i32, %c0_i32_0 : i32, i32
  }
  func.func @transform_4(%arg0: i32) -> (i32, i32) {
    %c0_i32 = arith.constant 0 : i32
    %c0_i32_0 = arith.constant 0 : i32
    %c0_i32_1 = arith.constant 0 : i32
    return %c0_i32, %c0_i32_0 : i32, i32
  }
  func.func @transform_5(%arg0: i32) -> (i32, i32) {
    %c0_i32 = arith.constant 0 : i32
    %c0_i32_0 = arith.constant 0 : i32
    return %arg0, %c0_i32 : i32, i32
  }
}

</mosaic_0001>

<llo_original>
// kernel: triplet_net_forward.1
$region0: #{triplet_net_forward.1}
  #allocation0 [shape = 'u32[]', space=smem, size = 0x4, offset = 0x4, fixed_abs, tag = 'smem constant byte address 0x4 - core index']
  #allocation1 [shape = 'u32[144,128]{1,0:T(1,128)}', space=vmem, size = 0x12000, scoped, tag = 'internal scratch']
  %s0 = inlined_call_operand.vmem [shape: bf16[1536,36], index: 0, kind: input, shape index: {}]
  %s1 = inlined_call_operand.vmem [shape: bf16[36,32], index: 1, kind: input, shape index: {}]
  %s2 = inlined_call_operand.vmem [shape: f32[1,32], index: 2, kind: input, shape index: {}]
  %s3 = inlined_call_operand.vmem [shape: f32[32,16], index: 3, kind: input, shape index: {}]
  %s4 = inlined_call_operand.vmem [shape: f32[1,16], index: 4, kind: input, shape index: {}]
  %s5 = inlined_call_operand.vmem [shape: f32[6,16], index: 5, kind: output, shape index: {}]
  %s6 = sld [smem:[#allocation0]]
  $region30: #{triplet_net_forward.1} parent=0
    _
  %s8 = ssub.s32 1, %s6
  %s9 = scalar_select 0, %s8, %s6
  // Predicated region
  $region2: #{triplet_net_forward.1} parent=0 // pred_check
    _
  $region3: #{triplet_net_forward.1} parent=0 // pred_check_branch
    %11 = sbr.rel (0) target = $region5
  $region4: #{triplet_net_forward.1} parent=0 // pred_region
    _
  $region5: #{triplet_net_forward.1} parent=0 // pred_fallthru
    _
  // Predicated region
  $region6: #{triplet_net_forward.1} parent=0 // pred_check
    _
  $region7: #{triplet_net_forward.1} parent=0 // pred_check_branch
    %13 = sbr.rel (0) target = $region9
  $region8: #{triplet_net_forward.1} parent=0 // pred_region
    _
  $region9: #{triplet_net_forward.1} parent=0 // pred_fallthru
    _
  // Predicated region
  $region10: #{triplet_net_forward.1} parent=0 // pred_check
    _
  $region11: #{triplet_net_forward.1} parent=0 // pred_check_branch
    %15 = sbr.rel (0) target = $region13
  $region12: #{triplet_net_forward.1} parent=0 // pred_region
    _
  $region13: #{triplet_net_forward.1} parent=0 // pred_fallthru
    _
  // Predicated region
  $region14: #{triplet_net_forward.1} parent=0 // pred_check
    _
  $region15: #{triplet_net_forward.1} parent=0 // pred_check_branch
    %17 = sbr.rel (0) target = $region17
  $region16: #{triplet_net_forward.1} parent=0 // pred_region
    _
  $region17: #{triplet_net_forward.1} parent=0 // pred_fallthru
    _
  // Predicated region
  $region18: #{triplet_net_forward.1} parent=0 // pred_check
    _
  $region19: #{triplet_net_forward.1} parent=0 // pred_check_branch
    %19 = sbr.rel (0) target = $region21
  $region20: #{triplet_net_forward.1} parent=0 // pred_region
    _
  $region21: #{triplet_net_forward.1} parent=0 // pred_fallthru
    _
  %v21 = vld [vmem:[%s0] sm:$0xf]
  %v22 = vld [vmem:[%s0 + $0x4] sm:$0xf]
  %v23 = vld [vmem:[%s0 + $0x8] sm:$0xf]
  %v24 = vld [vmem:[%s0 + $0xc] sm:$0xf]
  %v25 = vld [vmem:[%s0 + $0x10] sm:$0xf]
  %v26 = vld [vmem:[%s0 + $0x14] sm:$0xf]
  %v27 = vld [vmem:[%s0 + $0x18] sm:$0xf]
  %v28 = vld [vmem:[%s0 + $0x1c] sm:$0xf]
  %v29 = vld [vmem:[%s0 + $0x20] sm:$0xf]
  %v30 = vld [vmem:[%s0 + $0x24] sm:$0xf]
  %v31 = vld [vmem:[%s0 + $0x28] sm:$0xf]
  %v32 = vld [vmem:[%s0 + $0x2c] sm:$0xf]
  %v33 = vld [vmem:[%s0 + $0x30] sm:$0xf]
  %v34 = vld [vmem:[%s0 + $0x34] sm:$0xf]
  %v35 = vld [vmem:[%s0 + $0x38] sm:$0xf]
  %v36 = vld [vmem:[%s0 + $0x3c] sm:$0xf]
  %v37 = vld [vmem:[%s0 + $0x40] sm:$0xf]
  %v38 = vld [vmem:[%s0 + $0x44] sm:$0xf]
  %v39 = vld [vmem:[%s0 + $0x48] sm:$0xf]
  %v40 = vld [vmem:[%s0 + $0x4c] sm:$0xf]
  %v41 = vld [vmem:[%s0 + $0x50] sm:$0xf]
  %v42 = vld [vmem:[%s0 + $0x54] sm:$0xf]
  %v43 = vld [vmem:[%s0 + $0x58] sm:$0xf]
  %v44 = vld [vmem:[%s0 + $0x5c] sm:$0xf]
  %v45 = vld [vmem:[%s0 + $0x60] sm:$0xf]
  %v46 = vld [vmem:[%s0 + $0x64] sm:$0xf]
  %v47 = vld [vmem:[%s0 + $0x68] sm:$0xf]
  %v48 = vld [vmem:[%s0 + $0x6c] sm:$0xf]
  %v49 = vld [vmem:[%s0 + $0x70] sm:$0xf]
  %v50 = vld [vmem:[%s0 + $0x74] sm:$0xf]
  %v51 = vld [vmem:[%s0 + $0x78] sm:$0xf]
  %v52 = vld [vmem:[%s0 + $0x7c] sm:$0xf]
  %v53 = vld [vmem:[%s0 + $0x80] sm:$0xf]
  %v54 = vld [vmem:[%s0 + $0x84] sm:$0xf]
  %v55 = vld [vmem:[%s0 + $0x88] sm:$0xf]
  %v56 = vld [vmem:[%s0 + $0x8c] sm:$0xf]
  %v57 = vld [vmem:[%s0 + $0x90] sm:$0xf]
  %v58 = vld [vmem:[%s0 + $0x94] sm:$0xf]
  %v59 = vld [vmem:[%s0 + $0x98] sm:$0xf]
  %v60 = vld [vmem:[%s0 + $0x9c] sm:$0xf]
  %v61 = vld [vmem:[%s0 + $0xa0] sm:$0xf]
  %v62 = vld [vmem:[%s0 + $0xa4] sm:$0xf]
  %v63 = vld [vmem:[%s0 + $0xa8] sm:$0xf]
  %v64 = vld [vmem:[%s0 + $0xac] sm:$0xf]
  %v65 = vld [vmem:[%s0 + $0xb0] sm:$0xf]
  %v66 = vld [vmem:[%s0 + $0xb4] sm:$0xf]
  %v67 = vld [vmem:[%s0 + $0xb8] sm:$0xf]
  %v68 = vld [vmem:[%s0 + $0xbc] sm:$0xf]
  %v69 = vld [vmem:[%s0 + $0xc0] sm:$0xf]
  %v70 = vld [vmem:[%s0 + $0xc4] sm:$0xf]
  %v71 = vld [vmem:[%s0 + $0xc8] sm:$0xf]
  %v72 = vld [vmem:[%s0 + $0xcc] sm:$0xf]
  %v73 = vld [vmem:[%s0 + $0xd0] sm:$0xf]
  %v74 = vld [vmem:[%s0 + $0xd4] sm:$0xf]
  %v75 = vld [vmem:[%s0 + $0xd8] sm:$0xf]
  %v76 = vld [vmem:[%s0 + $0xdc] sm:$0xf]
  %v77 = vld [vmem:[%s0 + $0xe0] sm:$0xf]
  %v78 = vld [vmem:[%s0 + $0xe4] sm:$0xf]
  %v79 = vld [vmem:[%s0 + $0xe8] sm:$0xf]
  %v80 = vld [vmem:[%s0 + $0xec] sm:$0xf]
  %v81 = vld [vmem:[%s0 + $0xf0] sm:$0xf]
  %v82 = vld [vmem:[%s0 + $0xf4] sm:$0xf]
  %v83 = vld [vmem:[%s0 + $0xf8] sm:$0xf]
  %v84 = vld [vmem:[%s0 + $0xfc] sm:$0xf]
  %v85 = vld [vmem:[%s0 + $0x100] sm:$0xf]
  %v86 = vld [vmem:[%s0 + $0x104] sm:$0xf]
  %v87 = vld [vmem:[%s0 + $0x108] sm:$0xf]
  %v88 = vld [vmem:[%s0 + $0x10c] sm:$0xf]
  %v89 = vld [vmem:[%s0 + $0x110] sm:$0xf]
  %v90 = vld [vmem:[%s0 + $0x114] sm:$0xf]
  %v91 = vld [vmem:[%s0 + $0x118] sm:$0xf]
  %v92 = vld [vmem:[%s0 + $0x11c] sm:$0xf]
  %v93 = vld [vmem:[%s0 + $0x120] sm:$0xf]
  %v94 = vld [vmem:[%s0 + $0x124] sm:$0xf]
  %v95 = vld [vmem:[%s0 + $0x128] sm:$0xf]
  %v96 = vld [vmem:[%s0 + $0x12c] sm:$0xf]
  %v97 = vld [vmem:[%s0 + $0x130] sm:$0xf]
  %v98 = vld [vmem:[%s0 + $0x134] sm:$0xf]
  %v99 = vld [vmem:[%s0 + $0x138] sm:$0xf]
  %v100 = vld [vmem:[%s0 + $0x13c] sm:$0xf]
  %v101 = vld [vmem:[%s0 + $0x140] sm:$0xf]
  %v102 = vld [vmem:[%s0 + $0x144] sm:$0xf]
  %v103 = vld [vmem:[%s0 + $0x148] sm:$0xf]
  %v104 = vld [vmem:[%s0 + $0x14c] sm:$0xf]
  %v105 = vld [vmem:[%s0 + $0x150] sm:$0xf]
  %v106 = vld [vmem:[%s0 + $0x154] sm:$0xf]
  %v107 = vld [vmem:[%s0 + $0x158] sm:$0xf]
  %v108 = vld [vmem:[%s0 + $0x15c] sm:$0xf]
  %v109 = vld [vmem:[%s0 + $0x160] sm:$0xf]
  %v110 = vld [vmem:[%s0 + $0x164] sm:$0xf]
  %v111 = vld [vmem:[%s0 + $0x168] sm:$0xf]
  %v112 = vld [vmem:[%s0 + $0x16c] sm:$0xf]
  %v113 = vld [vmem:[%s0 + $0x170] sm:$0xf]
  %v114 = vld [vmem:[%s0 + $0x174] sm:$0xf]
  %v115 = vld [vmem:[%s0 + $0x178] sm:$0xf]
  %v116 = vld [vmem:[%s0 + $0x17c] sm:$0xf]
  %v117 = vld [vmem:[%s0 + $0x180] sm:$0xf]
  %v118 = vld [vmem:[%s0 + $0x184] sm:$0xf]
  %v119 = vld [vmem:[%s0 + $0x188] sm:$0xf]
  %v120 = vld [vmem:[%s0 + $0x18c] sm:$0xf]
  %v121 = vld [vmem:[%s0 + $0x190] sm:$0xf]
  %v122 = vld [vmem:[%s0 + $0x194] sm:$0xf]
  %v123 = vld [vmem:[%s0 + $0x198] sm:$0xf]
  %v124 = vld [vmem:[%s0 + $0x19c] sm:$0xf]
  %v125 = vld [vmem:[%s0 + $0x1a0] sm:$0xf]
  %v126 = vld [vmem:[%s0 + $0x1a4] sm:$0xf]
  %v127 = vld [vmem:[%s0 + $0x1a8] sm:$0xf]
  %v128 = vld [vmem:[%s0 + $0x1ac] sm:$0xf]
  %v129 = vld [vmem:[%s0 + $0x1b0] sm:$0xf]
  %v130 = vld [vmem:[%s0 + $0x1b4] sm:$0xf]
  %v131 = vld [vmem:[%s0 + $0x1b8] sm:$0xf]
  %v132 = vld [vmem:[%s0 + $0x1bc] sm:$0xf]
  %v133 = vld [vmem:[%s0 + $0x1c0] sm:$0xf]
  %v134 = vld [vmem:[%s0 + $0x1c4] sm:$0xf]
  %v135 = vld [vmem:[%s0 + $0x1c8] sm:$0xf]
  %v136 = vld [vmem:[%s0 + $0x1cc] sm:$0xf]
  %v137 = vld [vmem:[%s0 + $0x1d0] sm:$0xf]
  %v138 = vld [vmem:[%s0 + $0x1d4] sm:$0xf]
  %v139 = vld [vmem:[%s0 + $0x1d8] sm:$0xf]
  %v140 = vld [vmem:[%s0 + $0x1dc] sm:$0xf]
  %v141 = vld [vmem:[%s0 + $0x1e0] sm:$0xf]
  %v142 = vld [vmem:[%s0 + $0x1e4] sm:$0xf]
  %v143 = vld [vmem:[%s0 + $0x1e8] sm:$0xf]
  %v144 = vld [vmem:[%s0 + $0x1ec] sm:$0xf]
  %v145 = vld [vmem:[%s0 + $0x1f0] sm:$0xf]
  %v146 = vld [vmem:[%s0 + $0x1f4] sm:$0xf]
  %v147 = vld [vmem:[%s0 + $0x1f8] sm:$0xf]
  %v148 = vld [vmem:[%s0 + $0x1fc] sm:$0xf]
  %v149 = vld [vmem:[%s0 + $0x200] sm:$0xf]
  %v150 = vld [vmem:[%s0 + $0x204] sm:$0xf]
  %v151 = vld [vmem:[%s0 + $0x208] sm:$0xf]
  %v152 = vld [vmem:[%s0 + $0x20c] sm:$0xf]
  %v153 = vld [vmem:[%s0 + $0x210] sm:$0xf]
  %v154 = vld [vmem:[%s0 + $0x214] sm:$0xf]
  %v155 = vld [vmem:[%s0 + $0x218] sm:$0xf]
  %v156 = vld [vmem:[%s0 + $0x21c] sm:$0xf]
  %v157 = vld [vmem:[%s0 + $0x220] sm:$0xf]
  %v158 = vld [vmem:[%s0 + $0x224] sm:$0xf]
  %v159 = vld [vmem:[%s0 + $0x228] sm:$0xf]
  %v160 = vld [vmem:[%s0 + $0x22c] sm:$0xf]
  %v161 = vld [vmem:[%s0 + $0x230] sm:$0xf]
  %v162 = vld [vmem:[%s0 + $0x234] sm:$0xf]
  %v163 = vld [vmem:[%s0 + $0x238] sm:$0xf]
  %v164 = vld [vmem:[%s0 + $0x23c] sm:$0xf]
  %v165 = vld [vmem:[%s0 + $0x240] sm:$0xf]
  %v166 = vld [vmem:[%s0 + $0x244] sm:$0xf]
  %v167 = vld [vmem:[%s0 + $0x248] sm:$0xf]
  %v168 = vld [vmem:[%s0 + $0x24c] sm:$0xf]
  %v169 = vld [vmem:[%s0 + $0x250] sm:$0xf]
  %v170 = vld [vmem:[%s0 + $0x254] sm:$0xf]
  %v171 = vld [vmem:[%s0 + $0x258] sm:$0xf]
  %v172 = vld [vmem:[%s0 + $0x25c] sm:$0xf]
  %v173 = vld [vmem:[%s0 + $0x260] sm:$0xf]
  %v174 = vld [vmem:[%s0 + $0x264] sm:$0xf]
  %v175 = vld [vmem:[%s0 + $0x268] sm:$0xf]
  %v176 = vld [vmem:[%s0 + $0x26c] sm:$0xf]
  %v177 = vld [vmem:[%s0 + $0x270] sm:$0xf]
  %v178 = vld [vmem:[%s0 + $0x274] sm:$0xf]
  %v179 = vld [vmem:[%s0 + $0x278] sm:$0xf]
  %v180 = vld [vmem:[%s0 + $0x27c] sm:$0xf]
  %v181 = vld [vmem:[%s0 + $0x280] sm:$0xf]
  %v182 = vld [vmem:[%s0 + $0x284] sm:$0xf]
  %v183 = vld [vmem:[%s0 + $0x288] sm:$0xf]
  %v184 = vld [vmem:[%s0 + $0x28c] sm:$0xf]
  %v185 = vld [vmem:[%s0 + $0x290] sm:$0xf]
  %v186 = vld [vmem:[%s0 + $0x294] sm:$0xf]
  %v187 = vld [vmem:[%s0 + $0x298] sm:$0xf]
  %v188 = vld [vmem:[%s0 + $0x29c] sm:$0xf]
  %v189 = vld [vmem:[%s0 + $0x2a0] sm:$0xf]
  %v190 = vld [vmem:[%s0 + $0x2a4] sm:$0xf]
  %v191 = vld [vmem:[%s0 + $0x2a8] sm:$0xf]
  %v192 = vld [vmem:[%s0 + $0x2ac] sm:$0xf]
  %v193 = vld [vmem:[%s0 + $0x2b0] sm:$0xf]
  %v194 = vld [vmem:[%s0 + $0x2b4] sm:$0xf]
  %v195 = vld [vmem:[%s0 + $0x2b8] sm:$0xf]
  %v196 = vld [vmem:[%s0 + $0x2bc] sm:$0xf]
  %v197 = vld [vmem:[%s0 + $0x2c0] sm:$0xf]
  %v198 = vld [vmem:[%s0 + $0x2c4] sm:$0xf]
  %v199 = vld [vmem:[%s0 + $0x2c8] sm:$0xf]
  %v200 = vld [vmem:[%s0 + $0x2cc] sm:$0xf]
  %v201 = vld [vmem:[%s0 + $0x2d0] sm:$0xf]
  %v202 = vld [vmem:[%s0 + $0x2d4] sm:$0xf]
  %v203 = vld [vmem:[%s0 + $0x2d8] sm:$0xf]
  %v204 = vld [vmem:[%s0 + $0x2dc] sm:$0xf]
  %v205 = vld [vmem:[%s0 + $0x2e0] sm:$0xf]
  %v206 = vld [vmem:[%s0 + $0x2e4] sm:$0xf]
  %v207 = vld [vmem:[%s0 + $0x2e8] sm:$0xf]
  %v208 = vld [vmem:[%s0 + $0x2ec] sm:$0xf]
  %v209 = vld [vmem:[%s0 + $0x2f0] sm:$0xf]
  %v210 = vld [vmem:[%s0 + $0x2f4] sm:$0xf]
  %v211 = vld [vmem:[%s0 + $0x2f8] sm:$0xf]
  %v212 = vld [vmem:[%s0 + $0x2fc] sm:$0xf]
  %v213 = vld [vmem:[%s1] sm:$0xf]
  %v214 = vld [vmem:[%s1 + $0x4] sm:$0xf]
  %v215 = vld [vmem:[%s1 + $0x8] sm:$0xf]
  %v216 = vld [vmem:[%s1 + $0xc] sm:$0xf]
  %v217 = vld [vmem:[%s1 + $0x10] sm:$0x3]
  %v218 = vld [vmem:[%s2] sm:$0x1]
  %v220 = vlaneseq
  %v221 = vshrl.u32 %v220, 7
  %v222 = vsub.s32 0, %v221
  %v223 = vrot.slane %v218, %v222
  %v417 = vunpack.c.l.b16 %v21
  %v418 = vunpack.c.l.b16 %v22
  %v419 = vunpack.c.l.b16 %v23
  %v420 = vunpack.c.l.b16 %v24
  %v421 = vunpack.c.l.b16 %v25
  %v422 = vunpack.c.l.b16 %v26
  %v423 = vunpack.c.l.b16 %v27
  %v424 = vunpack.c.l.b16 %v28
  %v425 = vunpack.c.l.b16 %v29
  %v426 = vunpack.c.l.b16 %v30
  %v427 = vunpack.c.l.b16 %v31
  %v428 = vunpack.c.l.b16 %v32
  %v429 = vunpack.c.l.b16 %v33
  %v430 = vunpack.c.l.b16 %v34
  %v431 = vunpack.c.l.b16 %v35
  %v432 = vunpack.c.l.b16 %v36
  %v433 = vunpack.c.l.b16 %v37
  %v434 = vunpack.c.l.b16 %v38
  %v435 = vunpack.c.l.b16 %v39
  %v436 = vunpack.c.l.b16 %v40
  %v437 = vunpack.c.l.b16 %v41
  %v438 = vunpack.c.l.b16 %v42
  %v439 = vunpack.c.l.b16 %v43
  %v440 = vunpack.c.l.b16 %v44
  %v441 = vunpack.c.l.b16 %v45
  %v442 = vunpack.c.l.b16 %v46
  %v443 = vunpack.c.l.b16 %v47
  %v444 = vunpack.c.l.b16 %v48
  %v445 = vunpack.c.l.b16 %v49
  %v446 = vunpack.c.l.b16 %v50
  %v447 = vunpack.c.l.b16 %v51
  %v448 = vunpack.c.l.b16 %v52
  %v449 = vunpack.c.l.b16 %v53
  %v450 = vunpack.c.l.b16 %v54
  %v451 = vunpack.c.l.b16 %v55
  %v452 = vunpack.c.l.b16 %v56
  %v453 = vunpack.c.l.b16 %v57
  %v454 = vunpack.c.l.b16 %v58
  %v455 = vunpack.c.l.b16 %v59
  %v456 = vunpack.c.l.b16 %v60
  %v457 = vunpack.c.l.b16 %v61
  %v458 = vunpack.c.l.b16 %v62
  %v459 = vunpack.c.l.b16 %v63
  %v460 = vunpack.c.l.b16 %v64
  %v461 = vunpack.c.l.b16 %v65
  %v462 = vunpack.c.l.b16 %v66
  %v463 = vunpack.c.l.b16 %v67
  %v464 = vunpack.c.l.b16 %v68
  %v465 = vunpack.c.l.b16 %v69
  %v466 = vunpack.c.l.b16 %v70
  %v467 = vunpack.c.l.b16 %v71
  %v468 = vunpack.c.l.b16 %v72
  %v469 = vunpack.c.l.b16 %v73
  %v470 = vunpack.c.l.b16 %v74
  %v471 = vunpack.c.l.b16 %v75
  %v472 = vunpack.c.l.b16 %v76
  %v473 = vunpack.c.l.b16 %v77
  %v474 = vunpack.c.l.b16 %v78
  %v475 = vunpack.c.l.b16 %v79
  %v476 = vunpack.c.l.b16 %v80
  %v477 = vunpack.c.l.b16 %v81
  %v478 = vunpack.c.l.b16 %v82
  %v479 = vunpack.c.l.b16 %v83
  %v480 = vunpack.c.l.b16 %v84
  %v481 = vunpack.c.l.b16 %v85
  %v482 = vunpack.c.l.b16 %v86
  %v483 = vunpack.c.l.b16 %v87
  %v484 = vunpack.c.l.b16 %v88
  %v485 = vunpack.c.l.b16 %v89
  %v486 = vunpack.c.l.b16 %v90
  %v487 = vunpack.c.l.b16 %v91
  %v488 = vunpack.c.l.b16 %v92
  %v489 = vunpack.c.l.b16 %v93
  %v490 = vunpack.c.l.b16 %v94
  %v491 = vunpack.c.l.b16 %v95
  %v492 = vunpack.c.l.b16 %v96
  %v493 = vunpack.c.l.b16 %v97
  %v494 = vunpack.c.l.b16 %v98
  %v495 = vunpack.c.l.b16 %v99
  %v496 = vunpack.c.l.b16 %v100
  %v497 = vunpack.c.l.b16 %v101
  %v498 = vunpack.c.l.b16 %v102
  %v499 = vunpack.c.l.b16 %v103
  %v500 = vunpack.c.l.b16 %v104
  %v501 = vunpack.c.l.b16 %v105
  %v502 = vunpack.c.l.b16 %v106
  %v503 = vunpack.c.l.b16 %v107
  %v504 = vunpack.c.l.b16 %v108
  %v505 = vunpack.c.l.b16 %v109
  %v506 = vunpack.c.l.b16 %v110
  %v507 = vunpack.c.l.b16 %v111
  %v508 = vunpack.c.l.b16 %v112
  %v509 = vunpack.c.l.b16 %v113
  %v510 = vunpack.c.l.b16 %v114
  %v511 = vunpack.c.l.b16 %v115
  %v512 = vunpack.c.l.b16 %v116
  %v513 = vunpack.c.l.b16 %v117
  %v514 = vunpack.c.l.b16 %v118
  %v515 = vunpack.c.l.b16 %v119
  %v516 = vunpack.c.l.b16 %v120
  %v517 = vunpack.c.l.b16 %v121
  %v518 = vunpack.c.l.b16 %v122
  %v519 = vunpack.c.l.b16 %v123
  %v520 = vunpack.c.l.b16 %v124
  %v521 = vunpack.c.l.b16 %v125
  %v522 = vunpack.c.l.b16 %v126
  %v523 = vunpack.c.l.b16 %v127
  %v524 = vunpack.c.l.b16 %v128
  %v525 = vunpack.c.l.b16 %v129
  %v526 = vunpack.c.l.b16 %v130
  %v527 = vunpack.c.l.b16 %v131
  %v528 = vunpack.c.l.b16 %v132
  %v529 = vunpack.c.l.b16 %v133
  %v530 = vunpack.c.l.b16 %v134
  %v531 = vunpack.c.l.b16 %v135
  %v532 = vunpack.c.l.b16 %v136
  %v533 = vunpack.c.l.b16 %v137
  %v534 = vunpack.c.l.b16 %v138
  %v535 = vunpack.c.l.b16 %v139
  %v536 = vunpack.c.l.b16 %v140
  %v537 = vunpack.c.l.b16 %v141
  %v538 = vunpack.c.l.b16 %v142
  %v539 = vunpack.c.l.b16 %v143
  %v540 = vunpack.c.l.b16 %v144
  %v541 = vunpack.c.l.b16 %v145
  %v542 = vunpack.c.l.b16 %v146
  %v543 = vunpack.c.l.b16 %v147
  %v544 = vunpack.c.l.b16 %v148
  %v545 = vunpack.c.l.b16 %v149
  %v546 = vunpack.c.l.b16 %v150
  %v547 = vunpack.c.l.b16 %v151
  %v548 = vunpack.c.l.b16 %v152
  %v549 = vunpack.c.l.b16 %v153
  %v550 = vunpack.c.l.b16 %v154
  %v551 = vunpack.c.l.b16 %v155
  %v552 = vunpack.c.l.b16 %v156
  %v553 = vunpack.c.l.b16 %v157
  %v554 = vunpack.c.l.b16 %v158
  %v555 = vunpack.c.l.b16 %v159
  %v556 = vunpack.c.l.b16 %v160
  %v557 = vunpack.c.l.b16 %v161
  %v558 = vunpack.c.l.b16 %v162
  %v559 = vunpack.c.l.b16 %v163
  %v560 = vunpack.c.l.b16 %v164
  %v561 = vunpack.c.l.b16 %v165
  %v562 = vunpack.c.l.b16 %v166
  %v563 = vunpack.c.l.b16 %v167
  %v564 = vunpack.c.l.b16 %v168
  %v565 = vunpack.c.l.b16 %v169
  %v566 = vunpack.c.l.b16 %v170
  %v567 = vunpack.c.l.b16 %v171
  %v568 = vunpack.c.l.b16 %v172
  %v569 = vunpack.c.l.b16 %v173
  %v570 = vunpack.c.l.b16 %v174
  %v571 = vunpack.c.l.b16 %v175
  %v572 = vunpack.c.l.b16 %v176
  %v573 = vunpack.c.l.b16 %v177
  %v574 = vunpack.c.l.b16 %v178
  %v575 = vunpack.c.l.b16 %v179
  %v576 = vunpack.c.l.b16 %v180
  %v577 = vunpack.c.l.b16 %v181
  %v578 = vunpack.c.l.b16 %v182
  %v579 = vunpack.c.l.b16 %v183
  %v580 = vunpack.c.l.b16 %v184
  %v581 = vunpack.c.l.b16 %v185
  %v582 = vunpack.c.l.b16 %v186
  %v583 = vunpack.c.l.b16 %v187
  %v584 = vunpack.c.l.b16 %v188
  %v585 = vunpack.c.l.b16 %v189
  %v586 = vunpack.c.l.b16 %v190
  %v587 = vunpack.c.l.b16 %v191
  %v588 = vunpack.c.l.b16 %v192
  %v589 = vunpack.c.l.b16 %v193
  %v590 = vunpack.c.l.b16 %v194
  %v591 = vunpack.c.l.b16 %v195
  %v592 = vunpack.c.l.b16 %v196
  %v593 = vunpack.c.l.b16 %v197
  %v594 = vunpack.c.l.b16 %v198
  %v595 = vunpack.c.l.b16 %v199
  %v596 = vunpack.c.l.b16 %v200
  %v597 = vunpack.c.l.b16 %v201
  %v598 = vunpack.c.l.b16 %v202
  %v599 = vunpack.c.l.b16 %v203
  %v600 = vunpack.c.l.b16 %v204
  %v601 = vunpack.c.l.b16 %v205
  %v602 = vunpack.c.l.b16 %v206
  %v603 = vunpack.c.l.b16 %v207
  %v604 = vunpack.c.l.b16 %v208
  %v605 = vunpack.c.l.b16 %v209
  %v606 = vunpack.c.l.b16 %v210
  %v607 = vunpack.c.l.b16 %v211
  %v608 = vunpack.c.l.b16 %v212
  %v609 = vpack.c.b16 %v418, %v417
  %v610 = vpack.c.b16 %v420, %v419
  %v611 = vpack.c.b16 %v422, %v421
  %v612 = vpack.c.b16 %v424, %v423
  %v613 = vpack.c.b16 %v426, %v425
  %v614 = vpack.c.b16 %v428, %v427
  %v615 = vpack.c.b16 %v430, %v429
  %v616 = vpack.c.b16 %v432, %v431
  %v617 = vpack.c.b16 %v434, %v433
  %v618 = vpack.c.b16 %v436, %v435
  %v619 = vpack.c.b16 %v438, %v437
  %v620 = vpack.c.b16 %v440, %v439
  %v621 = vpack.c.b16 %v442, %v441
  %v622 = vpack.c.b16 %v444, %v443
  %v623 = vpack.c.b16 %v446, %v445
  %v624 = vpack.c.b16 %v448, %v447
  %v625 = vpack.c.b16 %v450, %v449
  %v626 = vpack.c.b16 %v452, %v451
  %v627 = vpack.c.b16 %v454, %v453
  %v628 = vpack.c.b16 %v456, %v455
  %v629 = vpack.c.b16 %v458, %v457
  %v630 = vpack.c.b16 %v460, %v459
  %v631 = vpack.c.b16 %v462, %v461
  %v632 = vpack.c.b16 %v464, %v463
  %v633 = vpack.c.b16 %v466, %v465
  %v634 = vpack.c.b16 %v468, %v467
  %v635 = vpack.c.b16 %v470, %v469
  %v636 = vpack.c.b16 %v472, %v471
  %v637 = vpack.c.b16 %v474, %v473
  %v638 = vpack.c.b16 %v476, %v475
  %v639 = vpack.c.b16 %v478, %v477
  %v640 = vpack.c.b16 %v480, %v479
  %v641 = vpack.c.b16 %v482, %v481
  %v642 = vpack.c.b16 %v484, %v483
  %v643 = vpack.c.b16 %v486, %v485
  %v644 = vpack.c.b16 %v488, %v487
  %v645 = vpack.c.b16 %v490, %v489
  %v646 = vpack.c.b16 %v492, %v491
  %v647 = vpack.c.b16 %v494, %v493
  %v648 = vpack.c.b16 %v496, %v495
  %v649 = vpack.c.b16 %v498, %v497
  %v650 = vpack.c.b16 %v500, %v499
  %v651 = vpack.c.b16 %v502, %v501
  %v652 = vpack.c.b16 %v504, %v503
  %v653 = vpack.c.b16 %v506, %v505
  %v654 = vpack.c.b16 %v508, %v507
  %v655 = vpack.c.b16 %v510, %v509
  %v656 = vpack.c.b16 %v512, %v511
  %v657 = vpack.c.b16 %v514, %v513
  %v658 = vpack.c.b16 %v516, %v515
  %v659 = vpack.c.b16 %v518, %v517
  %v660 = vpack.c.b16 %v520, %v519
  %v661 = vpack.c.b16 %v522, %v521
  %v662 = vpack.c.b16 %v524, %v523
  %v663 = vpack.c.b16 %v526, %v525
  %v664 = vpack.c.b16 %v528, %v527
  %v665 = vpack.c.b16 %v530, %v529
  %v666 = vpack.c.b16 %v532, %v531
  %v667 = vpack.c.b16 %v534, %v533
  %v668 = vpack.c.b16 %v536, %v535
  %v669 = vpack.c.b16 %v538, %v537
  %v670 = vpack.c.b16 %v540, %v539
  %v671 = vpack.c.b16 %v542, %v541
  %v672 = vpack.c.b16 %v544, %v543
  %v673 = vpack.c.b16 %v546, %v545
  %v674 = vpack.c.b16 %v548, %v547
  %v675 = vpack.c.b16 %v550, %v549
  %v676 = vpack.c.b16 %v552, %v551
  %v677 = vpack.c.b16 %v554, %v553
  %v678 = vpack.c.b16 %v556, %v555
  %v679 = vpack.c.b16 %v558, %v557
  %v680 = vpack.c.b16 %v560, %v559
  %v681 = vpack.c.b16 %v562, %v561
  %v682 = vpack.c.b16 %v564, %v563
  %v683 = vpack.c.b16 %v566, %v565
  %v684 = vpack.c.b16 %v568, %v567
  %v685 = vpack.c.b16 %v570, %v569
  %v686 = vpack.c.b16 %v572, %v571
  %v687 = vpack.c.b16 %v574, %v573
  %v688 = vpack.c.b16 %v576, %v575
  %v689 = vpack.c.b16 %v578, %v577
  %v690 = vpack.c.b16 %v580, %v579
  %v691 = vpack.c.b16 %v582, %v581
  %v692 = vpack.c.b16 %v584, %v583
  %v693 = vpack.c.b16 %v586, %v585
  %v694 = vpack.c.b16 %v588, %v587
  %v695 = vpack.c.b16 %v590, %v589
  %v696 = vpack.c.b16 %v592, %v591
  %v697 = vpack.c.b16 %v594, %v593
  %v698 = vpack.c.b16 %v596, %v595
  %v699 = vpack.c.b16 %v598, %v597
  %v700 = vpack.c.b16 %v600, %v599
  %v701 = vpack.c.b16 %v602, %v601
  %v702 = vpack.c.b16 %v604, %v603
  %v703 = vpack.c.b16 %v606, %v605
  %v704 = vpack.c.b16 %v608, %v607
  %v710 = vunpack.c.l.b16 %v213
  %v711 = vunpack.c.l.b16 %v214
  %v712 = vunpack.c.l.b16 %v215
  %v713 = vunpack.c.l.b16 %v216
  %v714 = vunpack.c.l.b16 %v217
  %v715 = vpack.c.b16 %v711, %v710
  %v716 = vpack.c.b16 %v713, %v712
  %v717 = vpack.c.b16 %v714, %v714
  %vm720 = vcmask 293888
  %v722 = vsel %vm720, %v609, 0
  %v725 = vsel %vm720, %v610, 0
  %v728 = vsel %vm720, %v611, 0
  %v731 = vsel %vm720, %v612, 0
  %v734 = vsel %vm720, %v613, 0
  %v737 = vsel %vm720, %v614, 0
  %v740 = vsel %vm720, %v615, 0
  %v743 = vsel %vm720, %v616, 0
  %v746 = vsel %vm720, %v617, 0
  %v749 = vsel %vm720, %v618, 0
  %v752 = vsel %vm720, %v619, 0
  %v755 = vsel %vm720, %v620, 0
  %v758 = vsel %vm720, %v621, 0
  %v761 = vsel %vm720, %v622, 0
  %v764 = vsel %vm720, %v623, 0
  %v767 = vsel %vm720, %v624, 0
  %v770 = vsel %vm720, %v625, 0
  %v773 = vsel %vm720, %v626, 0
  %v776 = vsel %vm720, %v627, 0
  %v779 = vsel %vm720, %v628, 0
  %v782 = vsel %vm720, %v629, 0
  %v785 = vsel %vm720, %v630, 0
  %v788 = vsel %vm720, %v631, 0
  %v791 = vsel %vm720, %v632, 0
  %v794 = vsel %vm720, %v633, 0
  %v797 = vsel %vm720, %v634, 0
  %v800 = vsel %vm720, %v635, 0
  %v803 = vsel %vm720, %v636, 0
  %v806 = vsel %vm720, %v637, 0
  %v809 = vsel %vm720, %v638, 0
  %v812 = vsel %vm720, %v639, 0
  %v815 = vsel %vm720, %v640, 0
  %v818 = vsel %vm720, %v641, 0
  %v821 = vsel %vm720, %v642, 0
  %v824 = vsel %vm720, %v643, 0
  %v827 = vsel %vm720, %v644, 0
  %v830 = vsel %vm720, %v645, 0
  %v833 = vsel %vm720, %v646, 0
  %v836 = vsel %vm720, %v647, 0
  %v839 = vsel %vm720, %v648, 0
  %v842 = vsel %vm720, %v649, 0
  %v845 = vsel %vm720, %v650, 0
  %v848 = vsel %vm720, %v651, 0
  %v851 = vsel %vm720, %v652, 0
  %v854 = vsel %vm720, %v653, 0
  %v857 = vsel %vm720, %v654, 0
  %v860 = vsel %vm720, %v655, 0
  %v863 = vsel %vm720, %v656, 0
  %v866 = vsel %vm720, %v657, 0
  %v869 = vsel %vm720, %v658, 0
  %v872 = vsel %vm720, %v659, 0
  %v875 = vsel %vm720, %v660, 0
  %v878 = vsel %vm720, %v661, 0
  %v881 = vsel %vm720, %v662, 0
  %v884 = vsel %vm720, %v663, 0
  %v887 = vsel %vm720, %v664, 0
  %v890 = vsel %vm720, %v665, 0
  %v893 = vsel %vm720, %v666, 0
  %v896 = vsel %vm720, %v667, 0
  %v899 = vsel %vm720, %v668, 0
  %v902 = vsel %vm720, %v669, 0
  %v905 = vsel %vm720, %v670, 0
  %v908 = vsel %vm720, %v671, 0
  %v911 = vsel %vm720, %v672, 0
  %v914 = vsel %vm720, %v673, 0
  %v917 = vsel %vm720, %v674, 0
  %v920 = vsel %vm720, %v675, 0
  %v923 = vsel %vm720, %v676, 0
  %v926 = vsel %vm720, %v677, 0
  %v929 = vsel %vm720, %v678, 0
  %v932 = vsel %vm720, %v679, 0
  %v935 = vsel %vm720, %v680, 0
  %v938 = vsel %vm720, %v681, 0
  %v941 = vsel %vm720, %v682, 0
  %v944 = vsel %vm720, %v683, 0
  %v947 = vsel %vm720, %v684, 0
  %v950 = vsel %vm720, %v685, 0
  %v953 = vsel %vm720, %v686, 0
  %v956 = vsel %vm720, %v687, 0
  %v959 = vsel %vm720, %v688, 0
  %v962 = vsel %vm720, %v689, 0
  %v965 = vsel %vm720, %v690, 0
  %v968 = vsel %vm720, %v691, 0
  %v971 = vsel %vm720, %v692, 0
  %v974 = vsel %vm720, %v693, 0
  %v977 = vsel %vm720, %v694, 0
  %v980 = vsel %vm720, %v695, 0
  %v983 = vsel %vm720, %v696, 0
  %v986 = vsel %vm720, %v697, 0
  %v989 = vsel %vm720, %v698, 0
  %v992 = vsel %vm720, %v699, 0
  %v995 = vsel %vm720, %v700, 0
  %v998 = vsel %vm720, %v701, 0
  %v1001 = vsel %vm720, %v702, 0
  %v1004 = vsel %vm720, %v703, 0
  %v1007 = vsel %vm720, %v704, 0
  %vm1009 = vcmask 1041408
  %v1011 = vsel %vm1009, %v717, 0
  %1013 = vmatprep.subr.bf16.mxu0 0
  %1014 = vmatpush1.bf16.msra.mxu0 0
  %1015 = vmatprep.subr.bf16.mxu0 0
  %1016 = vmatpush1.bf16.msra.mxu0 0
  %1017 = vmatprep.subr.bf16.mxu0 0
  %1018 = vmatpush1.bf16.msra.mxu0 0
  %1019 = vmatprep.subr.bf16.mxu0 0
  %1020 = vmatpush1.bf16.msra.mxu0 0
  %1021 = vmatprep.subr.bf16.mxu0 0
  %1022 = vmatpush1.bf16.msra.mxu0 0
  %1023 = vmatprep.subr.bf16.mxu0 0
  %1024 = vmatpush1.bf16.msra.mxu0 %v1011
  %1025 = vmatprep.subr.bf16.mxu0 0
  %1026 = vmatpush1.bf16.msra.mxu0 %v716
  %1027 = vmatprep.subr.bf16.mxu0 0
  %1028 = vmatpush1.bf16.msra.mxu0 %v715
  %1029 = vmatprep.subr.bf16.mxu0 0
  %1030 = vmatpush2.bf16.msra.mxu0 0
  %1031 = vmatprep.subr.bf16.mxu0 0
  %1032 = vmatpush2.bf16.msra.mxu0 0
  %1033 = vmatprep.subr.bf16.mxu0 0
  %1034 = vmatpush2.bf16.msra.mxu0 0
  %1035 = vmatprep.subr.bf16.mxu0 0
  %1036 = vmatpush2.bf16.msra.mxu0 0
  %1037 = vmatprep.subr.bf16.mxu0 0
  %1038 = vmatpush2.bf16.msra.mxu0 0
  %1039 = vmatprep.subr.bf16.mxu0 0
  %1040 = vmatpush2.bf16.msra.mxu0 0
  %1041 = vmatprep.subr.bf16.mxu0 0
  %1042 = vmatpush2.bf16.msra.mxu0 0
  %1043 = vmatprep.subr.bf16.mxu0 0
  %1044 = vmatpush2.bf16.msra.mxu0 0
  %1045 = vmatprep.mubr.bf16.mxu0 0
  %1046 = vmatmul.mubr.bf16.gmra.mxu0 %v722
  %v1047 = vpop.f32.mrf.mxu0
  %v1048 = vadd.f32 %v223, %v1047
  %v1049 = vpop.f32.mrf.mxu0
  %v1050 = vpop.f32.mrf.mxu0
  %v1051 = vadd.f32 %v223, %v1050
  %v1052 = vpop.f32.mrf.mxu0
  %1053 = vmatprep.mubr.bf16.mxu0 0
  %1054 = vmatmul.mubr.bf16.gmra.mxu0 %v725
  %v1055 = vpop.f32.mrf.mxu0
  %v1056 = vadd.f32 %v223, %v1055
  %v1057 = vpop.f32.mrf.mxu0
  %v1058 = vpop.f32.mrf.mxu0
  %v1059 = vadd.f32 %v223, %v1058
  %v1060 = vpop.f32.mrf.mxu0
  %1061 = vmatprep.mubr.bf16.mxu0 0
  %1062 = vmatmul.mubr.bf16.gmra.mxu0 %v728
  %v1063 = vpop.f32.mrf.mxu0
  %v1064 = vadd.f32 %v223, %v1063
  %v1065 = vpop.f32.mrf.mxu0
  %v1066 = vpop.f32.mrf.mxu0
  %v1067 = vadd.f32 %v223, %v1066
  %v1068 = vpop.f32.mrf.mxu0
  %1069 = vmatprep.mubr.bf16.mxu0 0
  %1070 = vmatmul.mubr.bf16.gmra.mxu0 %v731
  %v1071 = vpop.f32.mrf.mxu0
  %v1072 = vadd.f32 %v223, %v1071
  %v1073 = vpop.f32.mrf.mxu0
  %v1074 = vpop.f32.mrf.mxu0
  %v1075 = vadd.f32 %v223, %v1074
  %v1076 = vpop.f32.mrf.mxu0
  %1077 = vmatprep.mubr.bf16.mxu0 0
  %1078 = vmatmul.mubr.bf16.gmra.mxu0 %v734
  %v1079 = vpop.f32.mrf.mxu0
  %v1080 = vadd.f32 %v223, %v1079
  %v1081 = vpop.f32.mrf.mxu0
  %v1082 = vpop.f32.mrf.mxu0
  %v1083 = vadd.f32 %v223, %v1082
  %v1084 = vpop.f32.mrf.mxu0
  %1085 = vmatprep.mubr.bf16.mxu0 0
  %1086 = vmatmul.mubr.bf16.gmra.mxu0 %v737
  %v1087 = vpop.f32.mrf.mxu0
  %v1088 = vadd.f32 %v223, %v1087
  %v1089 = vpop.f32.mrf.mxu0
  %v1090 = vpop.f32.mrf.mxu0
  %v1091 = vadd.f32 %v223, %v1090
  %v1092 = vpop.f32.mrf.mxu0
  %1093 = vmatprep.mubr.bf16.mxu0 0
  %1094 = vmatmul.mubr.bf16.gmra.mxu0 %v740
  %v1095 = vpop.f32.mrf.mxu0
  %v1096 = vadd.f32 %v223, %v1095
  %v1097 = vpop.f32.mrf.mxu0
  %v1098 = vpop.f32.mrf.mxu0
  %v1099 = vadd.f32 %v223, %v1098
  %v1100 = vpop.f32.mrf.mxu0
  %1101 = vmatprep.mubr.bf16.mxu0 0
  %1102 = vmatmul.mubr.bf16.gmra.mxu0 %v743
  %v1103 = vpop.f32.mrf.mxu0
  %v1104 = vadd.f32 %v223, %v1103
  %v1105 = vpop.f32.mrf.mxu0
  %v1106 = vpop.f32.mrf.mxu0
  %v1107 = vadd.f32 %v223, %v1106
  %v1108 = vpop.f32.mrf.mxu0
  %1109 = vmatprep.mubr.bf16.mxu0 0
  %1110 = vmatmul.mubr.bf16.gmra.mxu0 %v746
  %v1111 = vpop.f32.mrf.mxu0
  %v1112 = vadd.f32 %v223, %v1111
  %v1113 = vpop.f32.mrf.mxu0
  %v1114 = vpop.f32.mrf.mxu0
  %v1115 = vadd.f32 %v223, %v1114
  %v1116 = vpop.f32.mrf.mxu0
  %1117 = vmatprep.mubr.bf16.mxu0 0
  %1118 = vmatmul.mubr.bf16.gmra.mxu0 %v749
  %v1119 = vpop.f32.mrf.mxu0
  %v1120 = vadd.f32 %v223, %v1119
  %v1121 = vpop.f32.mrf.mxu0
  %v1122 = vpop.f32.mrf.mxu0
  %v1123 = vadd.f32 %v223, %v1122
  %v1124 = vpop.f32.mrf.mxu0
  %1125 = vmatprep.mubr.bf16.mxu0 0
  %1126 = vmatmul.mubr.bf16.gmra.mxu0 %v752
  %v1127 = vpop.f32.mrf.mxu0
  %v1128 = vadd.f32 %v223, %v1127
  %v1129 = vpop.f32.mrf.mxu0
  %v1130 = vpop.f32.mrf.mxu0
  %v1131 = vadd.f32 %v223, %v1130
  %v1132 = vpop.f32.mrf.mxu0
  %1133 = vmatprep.mubr.bf16.mxu0 0
  %1134 = vmatmul.mubr.bf16.gmra.mxu0 %v755
  %v1135 = vpop.f32.mrf.mxu0
  %v1136 = vadd.f32 %v223, %v1135
  %v1137 = vpop.f32.mrf.mxu0
  %v1138 = vpop.f32.mrf.mxu0
  %v1139 = vadd.f32 %v223, %v1138
  %v1140 = vpop.f32.mrf.mxu0
  %1141 = vmatprep.mubr.bf16.mxu0 0
  %1142 = vmatmul.mubr.bf16.gmra.mxu0 %v758
  %v1143 = vpop.f32.mrf.mxu0
  %v1144 = vadd.f32 %v223, %v1143
  %v1145 = vpop.f32.mrf.mxu0
  %v1146 = vpop.f32.mrf.mxu0
  %v1147 = vadd.f32 %v223, %v1146
  %v1148 = vpop.f32.mrf.mxu0
  %1149 = vmatprep.mubr.bf16.mxu0 0
  %1150 = vmatmul.mubr.bf16.gmra.mxu0 %v761
  %v1151 = vpop.f32.mrf.mxu0
  %v1152 = vadd.f32 %v223, %v1151
  %v1153 = vpop.f32.mrf.mxu0
  %v1154 = vpop.f32.mrf.mxu0
  %v1155 = vadd.f32 %v223, %v1154
  %v1156 = vpop.f32.mrf.mxu0
  %1157 = vmatprep.mubr.bf16.mxu0 0
  %1158 = vmatmul.mubr.bf16.gmra.mxu0 %v764
  %v1159 = vpop.f32.mrf.mxu0
  %v1160 = vadd.f32 %v223, %v1159
  %v1161 = vpop.f32.mrf.mxu0
  %v1162 = vpop.f32.mrf.mxu0
  %v1163 = vadd.f32 %v223, %v1162
  %v1164 = vpop.f32.mrf.mxu0
  %1165 = vmatprep.mubr.bf16.mxu0 0
  %1166 = vmatmul.mubr.bf16.gmra.mxu0 %v767
  %v1167 = vpop.f32.mrf.mxu0
  %v1168 = vadd.f32 %v223, %v1167
  %v1169 = vpop.f32.mrf.mxu0
  %v1170 = vpop.f32.mrf.mxu0
  %v1171 = vadd.f32 %v223, %v1170
  %v1172 = vpop.f32.mrf.mxu0
  %1173 = vmatprep.mubr.bf16.mxu0 0
  %1174 = vmatmul.mubr.bf16.gmra.mxu0 %v770
  %v1175 = vpop.f32.mrf.mxu0
  %v1176 = vadd.f32 %v223, %v1175
  %v1177 = vpop.f32.mrf.mxu0
  %v1178 = vpop.f32.mrf.mxu0
  %v1179 = vadd.f32 %v223, %v1178
  %v1180 = vpop.f32.mrf.mxu0
  %1181 = vmatprep.mubr.bf16.mxu0 0
  %1182 = vmatmul.mubr.bf16.gmra.mxu0 %v773
  %v1183 = vpop.f32.mrf.mxu0
  %v1184 = vadd.f32 %v223, %v1183
  %v1185 = vpop.f32.mrf.mxu0
  %v1186 = vpop.f32.mrf.mxu0
  %v1187 = vadd.f32 %v223, %v1186
  %v1188 = vpop.f32.mrf.mxu0
  %1189 = vmatprep.mubr.bf16.mxu0 0
  %1190 = vmatmul.mubr.bf16.gmra.mxu0 %v776
  %v1191 = vpop.f32.mrf.mxu0
  %v1192 = vadd.f32 %v223, %v1191
  %v1193 = vpop.f32.mrf.mxu0
  %v1194 = vpop.f32.mrf.mxu0
  %v1195 = vadd.f32 %v223, %v1194
  %v1196 = vpop.f32.mrf.mxu0
  %1197 = vmatprep.mubr.bf16.mxu0 0
  %1198 = vmatmul.mubr.bf16.gmra.mxu0 %v779
  %v1199 = vpop.f32.mrf.mxu0
  %v1200 = vadd.f32 %v223, %v1199
  %v1201 = vpop.f32.mrf.mxu0
  %v1202 = vpop.f32.mrf.mxu0
  %v1203 = vadd.f32 %v223, %v1202
  %v1204 = vpop.f32.mrf.mxu0
  %1205 = vmatprep.mubr.bf16.mxu0 0
  %1206 = vmatmul.mubr.bf16.gmra.mxu0 %v782
  %v1207 = vpop.f32.mrf.mxu0
  %v1208 = vadd.f32 %v223, %v1207
  %v1209 = vpop.f32.mrf.mxu0
  %v1210 = vpop.f32.mrf.mxu0
  %v1211 = vadd.f32 %v223, %v1210
  %v1212 = vpop.f32.mrf.mxu0
  %1213 = vmatprep.mubr.bf16.mxu0 0
  %1214 = vmatmul.mubr.bf16.gmra.mxu0 %v785
  %v1215 = vpop.f32.mrf.mxu0
  %v1216 = vadd.f32 %v223, %v1215
  %v1217 = vpop.f32.mrf.mxu0
  %v1218 = vpop.f32.mrf.mxu0
  %v1219 = vadd.f32 %v223, %v1218
  %v1220 = vpop.f32.mrf.mxu0
  %1221 = vmatprep.mubr.bf16.mxu0 0
  %1222 = vmatmul.mubr.bf16.gmra.mxu0 %v788
  %v1223 = vpop.f32.mrf.mxu0
  %v1224 = vadd.f32 %v223, %v1223
  %v1225 = vpop.f32.mrf.mxu0
  %v1226 = vpop.f32.mrf.mxu0
  %v1227 = vadd.f32 %v223, %v1226
  %v1228 = vpop.f32.mrf.mxu0
  %1229 = vmatprep.mubr.bf16.mxu0 0
  %1230 = vmatmul.mubr.bf16.gmra.mxu0 %v791
  %v1231 = vpop.f32.mrf.mxu0
  %v1232 = vadd.f32 %v223, %v1231
  %v1233 = vpop.f32.mrf.mxu0
  %v1234 = vpop.f32.mrf.mxu0
  %v1235 = vadd.f32 %v223, %v1234
  %v1236 = vpop.f32.mrf.mxu0
  %1237 = vmatprep.mubr.bf16.mxu0 0
  %1238 = vmatmul.mubr.bf16.gmra.mxu0 %v794
  %v1239 = vpop.f32.mrf.mxu0
  %v1240 = vadd.f32 %v223, %v1239
  %v1241 = vpop.f32.mrf.mxu0
  %v1242 = vpop.f32.mrf.mxu0
  %v1243 = vadd.f32 %v223, %v1242
  %v1244 = vpop.f32.mrf.mxu0
  %1245 = vmatprep.mubr.bf16.mxu0 0
  %1246 = vmatmul.mubr.bf16.gmra.mxu0 %v797
  %v1247 = vpop.f32.mrf.mxu0
  %v1248 = vadd.f32 %v223, %v1247
  %v1249 = vpop.f32.mrf.mxu0
  %v1250 = vpop.f32.mrf.mxu0
  %v1251 = vadd.f32 %v223, %v1250
  %v1252 = vpop.f32.mrf.mxu0
  %1253 = vmatprep.mubr.bf16.mxu0 0
  %1254 = vmatmul.mubr.bf16.gmra.mxu0 %v800
  %v1255 = vpop.f32.mrf.mxu0
  %v1256 = vadd.f32 %v223, %v1255
  %v1257 = vpop.f32.mrf.mxu0
  %v1258 = vpop.f32.mrf.mxu0
  %v1259 = vadd.f32 %v223, %v1258
  %v1260 = vpop.f32.mrf.mxu0
  %1261 = vmatprep.mubr.bf16.mxu0 0
  %1262 = vmatmul.mubr.bf16.gmra.mxu0 %v803
  %v1263 = vpop.f32.mrf.mxu0
  %v1264 = vadd.f32 %v223, %v1263
  %v1265 = vpop.f32.mrf.mxu0
  %v1266 = vpop.f32.mrf.mxu0
  %v1267 = vadd.f32 %v223, %v1266
  %v1268 = vpop.f32.mrf.mxu0
  %1269 = vmatprep.mubr.bf16.mxu0 0
  %1270 = vmatmul.mubr.bf16.gmra.mxu0 %v806
  %v1271 = vpop.f32.mrf.mxu0
  %v1272 = vadd.f32 %v223, %v1271
  %v1273 = vpop.f32.mrf.mxu0
  %v1274 = vpop.f32.mrf.mxu0
  %v1275 = vadd.f32 %v223, %v1274
  %v1276 = vpop.f32.mrf.mxu0
  %1277 = vmatprep.mubr.bf16.mxu0 0
  %1278 = vmatmul.mubr.bf16.gmra.mxu0 %v809
  %v1279 = vpop.f32.mrf.mxu0
  %v1280 = vadd.f32 %v223, %v1279
  %v1281 = vpop.f32.mrf.mxu0
  %v1282 = vpop.f32.mrf.mxu0
  %v1283 = vadd.f32 %v223, %v1282
  %v1284 = vpop.f32.mrf.mxu0
  %1285 = vmatprep.mubr.bf16.mxu0 0
  %1286 = vmatmul.mubr.bf16.gmra.mxu0 %v812
  %v1287 = vpop.f32.mrf.mxu0
  %v1288 = vadd.f32 %v223, %v1287
  %v1289 = vpop.f32.mrf.mxu0
  %v1290 = vpop.f32.mrf.mxu0
  %v1291 = vadd.f32 %v223, %v1290
  %v1292 = vpop.f32.mrf.mxu0
  %1293 = vmatprep.mubr.bf16.mxu0 0
  %1294 = vmatmul.mubr.bf16.gmra.mxu0 %v815
  %v1295 = vpop.f32.mrf.mxu0
  %v1296 = vadd.f32 %v223, %v1295
  %v1297 = vpop.f32.mrf.mxu0
  %v1298 = vpop.f32.mrf.mxu0
  %v1299 = vadd.f32 %v223, %v1298
  %v1300 = vpop.f32.mrf.mxu0
  %1301 = vmatprep.mubr.bf16.mxu0 0
  %1302 = vmatmul.mubr.bf16.gmra.mxu0 %v818
  %v1303 = vpop.f32.mrf.mxu0
  %v1304 = vadd.f32 %v223, %v1303
  %v1305 = vpop.f32.mrf.mxu0
  %v1306 = vpop.f32.mrf.mxu0
  %v1307 = vadd.f32 %v223, %v1306
  %v1308 = vpop.f32.mrf.mxu0
  %1309 = vmatprep.mubr.bf16.mxu0 0
  %1310 = vmatmul.mubr.bf16.gmra.mxu0 %v821
  %v1311 = vpop.f32.mrf.mxu0
  %v1312 = vadd.f32 %v223, %v1311
  %v1313 = vpop.f32.mrf.mxu0
  %v1314 = vpop.f32.mrf.mxu0
  %v1315 = vadd.f32 %v223, %v1314
  %v1316 = vpop.f32.mrf.mxu0
  %1317 = vmatprep.mubr.bf16.mxu0 0
  %1318 = vmatmul.mubr.bf16.gmra.mxu0 %v824
  %v1319 = vpop.f32.mrf.mxu0
  %v1320 = vadd.f32 %v223, %v1319
  %v1321 = vpop.f32.mrf.mxu0
  %v1322 = vpop.f32.mrf.mxu0
  %v1323 = vadd.f32 %v223, %v1322
  %v1324 = vpop.f32.mrf.mxu0
  %1325 = vmatprep.mubr.bf16.mxu0 0
  %1326 = vmatmul.mubr.bf16.gmra.mxu0 %v827
  %v1327 = vpop.f32.mrf.mxu0
  %v1328 = vadd.f32 %v223, %v1327
  %v1329 = vpop.f32.mrf.mxu0
  %v1330 = vpop.f32.mrf.mxu0
  %v1331 = vadd.f32 %v223, %v1330
  %v1332 = vpop.f32.mrf.mxu0
  %1333 = vmatprep.mubr.bf16.mxu0 0
  %1334 = vmatmul.mubr.bf16.gmra.mxu0 %v830
  %v1335 = vpop.f32.mrf.mxu0
  %v1336 = vadd.f32 %v223, %v1335
  %v1337 = vpop.f32.mrf.mxu0
  %v1338 = vpop.f32.mrf.mxu0
  %v1339 = vadd.f32 %v223, %v1338
  %v1340 = vpop.f32.mrf.mxu0
  %1341 = vmatprep.mubr.bf16.mxu0 0
  %1342 = vmatmul.mubr.bf16.gmra.mxu0 %v833
  %v1343 = vpop.f32.mrf.mxu0
  %v1344 = vadd.f32 %v223, %v1343
  %v1345 = vpop.f32.mrf.mxu0
  %v1346 = vpop.f32.mrf.mxu0
  %v1347 = vadd.f32 %v223, %v1346
  %v1348 = vpop.f32.mrf.mxu0
  %1349 = vmatprep.mubr.bf16.mxu0 0
  %1350 = vmatmul.mubr.bf16.gmra.mxu0 %v836
  %v1351 = vpop.f32.mrf.mxu0
  %v1352 = vadd.f32 %v223, %v1351
  %v1353 = vpop.f32.mrf.mxu0
  %v1354 = vpop.f32.mrf.mxu0
  %v1355 = vadd.f32 %v223, %v1354
  %v1356 = vpop.f32.mrf.mxu0
  %1357 = vmatprep.mubr.bf16.mxu0 0
  %1358 = vmatmul.mubr.bf16.gmra.mxu0 %v839
  %v1359 = vpop.f32.mrf.mxu0
  %v1360 = vadd.f32 %v223, %v1359
  %v1361 = vpop.f32.mrf.mxu0
  %v1362 = vpop.f32.mrf.mxu0
  %v1363 = vadd.f32 %v223, %v1362
  %v1364 = vpop.f32.mrf.mxu0
  %1365 = vmatprep.mubr.bf16.mxu0 0
  %1366 = vmatmul.mubr.bf16.gmra.mxu0 %v842
  %v1367 = vpop.f32.mrf.mxu0
  %v1368 = vadd.f32 %v223, %v1367
  %v1369 = vpop.f32.mrf.mxu0
  %v1370 = vpop.f32.mrf.mxu0
  %v1371 = vadd.f32 %v223, %v1370
  %v1372 = vpop.f32.mrf.mxu0
  %1373 = vmatprep.mubr.bf16.mxu0 0
  %1374 = vmatmul.mubr.bf16.gmra.mxu0 %v845
  %v1375 = vpop.f32.mrf.mxu0
  %v1376 = vadd.f32 %v223, %v1375
  %v1377 = vpop.f32.mrf.mxu0
  %v1378 = vpop.f32.mrf.mxu0
  %v1379 = vadd.f32 %v223, %v1378
  %v1380 = vpop.f32.mrf.mxu0
  %1381 = vmatprep.mubr.bf16.mxu0 0
  %1382 = vmatmul.mubr.bf16.gmra.mxu0 %v848
  %v1383 = vpop.f32.mrf.mxu0
  %v1384 = vadd.f32 %v223, %v1383
  %v1385 = vpop.f32.mrf.mxu0
  %v1386 = vpop.f32.mrf.mxu0
  %v1387 = vadd.f32 %v223, %v1386
  %v1388 = vpop.f32.mrf.mxu0
  %1389 = vmatprep.mubr.bf16.mxu0 0
  %1390 = vmatmul.mubr.bf16.gmra.mxu0 %v851
  %v1391 = vpop.f32.mrf.mxu0
  %v1392 = vadd.f32 %v223, %v1391
  %v1393 = vpop.f32.mrf.mxu0
  %v1394 = vpop.f32.mrf.mxu0
  %v1395 = vadd.f32 %v223, %v1394
  %v1396 = vpop.f32.mrf.mxu0
  %1397 = vmatprep.mubr.bf16.mxu0 0
  %1398 = vmatmul.mubr.bf16.gmra.mxu0 %v854
  %v1399 = vpop.f32.mrf.mxu0
  %v1400 = vadd.f32 %v223, %v1399
  %v1401 = vpop.f32.mrf.mxu0
  %v1402 = vpop.f32.mrf.mxu0
  %v1403 = vadd.f32 %v223, %v1402
  %v1404 = vpop.f32.mrf.mxu0
  %1405 = vmatprep.mubr.bf16.mxu0 0
  %1406 = vmatmul.mubr.bf16.gmra.mxu0 %v857
  %v1407 = vpop.f32.mrf.mxu0
  %v1408 = vadd.f32 %v223, %v1407
  %v1409 = vpop.f32.mrf.mxu0
  %v1410 = vpop.f32.mrf.mxu0
  %v1411 = vadd.f32 %v223, %v1410
  %v1412 = vpop.f32.mrf.mxu0
  %1413 = vmatprep.mubr.bf16.mxu0 0
  %1414 = vmatmul.mubr.bf16.gmra.mxu0 %v860
  %v1415 = vpop.f32.mrf.mxu0
  %v1416 = vadd.f32 %v223, %v1415
  %v1417 = vpop.f32.mrf.mxu0
  %v1418 = vpop.f32.mrf.mxu0
  %v1419 = vadd.f32 %v223, %v1418
  %v1420 = vpop.f32.mrf.mxu0
  %1421 = vmatprep.mubr.bf16.mxu0 0
  %1422 = vmatmul.mubr.bf16.gmra.mxu0 %v863
  %v1423 = vpop.f32.mrf.mxu0
  %v1424 = vadd.f32 %v223, %v1423
  %v1425 = vpop.f32.mrf.mxu0
  %v1426 = vpop.f32.mrf.mxu0
  %v1427 = vadd.f32 %v223, %v1426
  %v1428 = vpop.f32.mrf.mxu0
  %1429 = vmatprep.mubr.bf16.mxu0 0
  %1430 = vmatmul.mubr.bf16.gmra.mxu0 %v866
  %v1431 = vpop.f32.mrf.mxu0
  %v1432 = vadd.f32 %v223, %v1431
  %v1433 = vpop.f32.mrf.mxu0
  %v1434 = vpop.f32.mrf.mxu0
  %v1435 = vadd.f32 %v223, %v1434
  %v1436 = vpop.f32.mrf.mxu0
  %1437 = vmatprep.mubr.bf16.mxu0 0
  %1438 = vmatmul.mubr.bf16.gmra.mxu0 %v869
  %v1439 = vpop.f32.mrf.mxu0
  %v1440 = vadd.f32 %v223, %v1439
  %v1441 = vpop.f32.mrf.mxu0
  %v1442 = vpop.f32.mrf.mxu0
  %v1443 = vadd.f32 %v223, %v1442
  %v1444 = vpop.f32.mrf.mxu0
  %1445 = vmatprep.mubr.bf16.mxu0 0
  %1446 = vmatmul.mubr.bf16.gmra.mxu0 %v872
  %v1447 = vpop.f32.mrf.mxu0
  %v1448 = vadd.f32 %v223, %v1447
  %v1449 = vpop.f32.mrf.mxu0
  %v1450 = vpop.f32.mrf.mxu0
  %v1451 = vadd.f32 %v223, %v1450
  %v1452 = vpop.f32.mrf.mxu0
  %1453 = vmatprep.mubr.bf16.mxu0 0
  %1454 = vmatmul.mubr.bf16.gmra.mxu0 %v875
  %v1455 = vpop.f32.mrf.mxu0
  %v1456 = vadd.f32 %v223, %v1455
  %v1457 = vpop.f32.mrf.mxu0
  %v1458 = vpop.f32.mrf.mxu0
  %v1459 = vadd.f32 %v223, %v1458
  %v1460 = vpop.f32.mrf.mxu0
  %1461 = vmatprep.mubr.bf16.mxu0 0
  %1462 = vmatmul.mubr.bf16.gmra.mxu0 %v878
  %v1463 = vpop.f32.mrf.mxu0
  %v1464 = vadd.f32 %v223, %v1463
  %v1465 = vpop.f32.mrf.mxu0
  %v1466 = vpop.f32.mrf.mxu0
  %v1467 = vadd.f32 %v223, %v1466
  %v1468 = vpop.f32.mrf.mxu0
  %1469 = vmatprep.mubr.bf16.mxu0 0
  %1470 = vmatmul.mubr.bf16.gmra.mxu0 %v881
  %v1471 = vpop.f32.mrf.mxu0
  %v1472 = vadd.f32 %v223, %v1471
  %v1473 = vpop.f32.mrf.mxu0
  %v1474 = vpop.f32.mrf.mxu0
  %v1475 = vadd.f32 %v223, %v1474
  %v1476 = vpop.f32.mrf.mxu0
  %1477 = vmatprep.mubr.bf16.mxu0 0
  %1478 = vmatmul.mubr.bf16.gmra.mxu0 %v884
  %v1479 = vpop.f32.mrf.mxu0
  %v1480 = vadd.f32 %v223, %v1479
  %v1481 = vpop.f32.mrf.mxu0
  %v1482 = vpop.f32.mrf.mxu0
  %v1483 = vadd.f32 %v223, %v1482
  %v1484 = vpop.f32.mrf.mxu0
  %1485 = vmatprep.mubr.bf16.mxu0 0
  %1486 = vmatmul.mubr.bf16.gmra.mxu0 %v887
  %v1487 = vpop.f32.mrf.mxu0
  %v1488 = vadd.f32 %v223, %v1487
  %v1489 = vpop.f32.mrf.mxu0
  %v1490 = vpop.f32.mrf.mxu0
  %v1491 = vadd.f32 %v223, %v1490
  %v1492 = vpop.f32.mrf.mxu0
  %1493 = vmatprep.mubr.bf16.mxu0 0
  %1494 = vmatmul.mubr.bf16.gmra.mxu0 %v890
  %v1495 = vpop.f32.mrf.mxu0
  %v1496 = vadd.f32 %v223, %v1495
  %v1497 = vpop.f32.mrf.mxu0
  %v1498 = vpop.f32.mrf.mxu0
  %v1499 = vadd.f32 %v223, %v1498
  %v1500 = vpop.f32.mrf.mxu0
  %1501 = vmatprep.mubr.bf16.mxu0 0
  %1502 = vmatmul.mubr.bf16.gmra.mxu0 %v893
  %v1503 = vpop.f32.mrf.mxu0
  %v1504 = vadd.f32 %v223, %v1503
  %v1505 = vpop.f32.mrf.mxu0
  %v1506 = vpop.f32.mrf.mxu0
  %v1507 = vadd.f32 %v223, %v1506
  %v1508 = vpop.f32.mrf.mxu0
  %1509 = vmatprep.mubr.bf16.mxu0 0
  %1510 = vmatmul.mubr.bf16.gmra.mxu0 %v896
  %v1511 = vpop.f32.mrf.mxu0
  %v1512 = vadd.f32 %v223, %v1511
  %v1513 = vpop.f32.mrf.mxu0
  %v1514 = vpop.f32.mrf.mxu0
  %v1515 = vadd.f32 %v223, %v1514
  %v1516 = vpop.f32.mrf.mxu0
  %1517 = vmatprep.mubr.bf16.mxu0 0
  %1518 = vmatmul.mubr.bf16.gmra.mxu0 %v899
  %v1519 = vpop.f32.mrf.mxu0
  %v1520 = vadd.f32 %v223, %v1519
  %v1521 = vpop.f32.mrf.mxu0
  %v1522 = vpop.f32.mrf.mxu0
  %v1523 = vadd.f32 %v223, %v1522
  %v1524 = vpop.f32.mrf.mxu0
  %1525 = vmatprep.mubr.bf16.mxu0 0
  %1526 = vmatmul.mubr.bf16.gmra.mxu0 %v902
  %v1527 = vpop.f32.mrf.mxu0
  %v1528 = vadd.f32 %v223, %v1527
  %v1529 = vpop.f32.mrf.mxu0
  %v1530 = vpop.f32.mrf.mxu0
  %v1531 = vadd.f32 %v223, %v1530
  %v1532 = vpop.f32.mrf.mxu0
  %1533 = vmatprep.mubr.bf16.mxu0 0
  %1534 = vmatmul.mubr.bf16.gmra.mxu0 %v905
  %v1535 = vpop.f32.mrf.mxu0
  %v1536 = vadd.f32 %v223, %v1535
  %v1537 = vpop.f32.mrf.mxu0
  %v1538 = vpop.f32.mrf.mxu0
  %v1539 = vadd.f32 %v223, %v1538
  %v1540 = vpop.f32.mrf.mxu0
  %1541 = vmatprep.mubr.bf16.mxu0 0
  %1542 = vmatmul.mubr.bf16.gmra.mxu0 %v908
  %v1543 = vpop.f32.mrf.mxu0
  %v1544 = vadd.f32 %v223, %v1543
  %v1545 = vpop.f32.mrf.mxu0
  %v1546 = vpop.f32.mrf.mxu0
  %v1547 = vadd.f32 %v223, %v1546
  %v1548 = vpop.f32.mrf.mxu0
  %1549 = vmatprep.mubr.bf16.mxu0 0
  %1550 = vmatmul.mubr.bf16.gmra.mxu0 %v911
  %v1551 = vpop.f32.mrf.mxu0
  %v1552 = vadd.f32 %v223, %v1551
  %v1553 = vpop.f32.mrf.mxu0
  %v1554 = vpop.f32.mrf.mxu0
  %v1555 = vadd.f32 %v223, %v1554
  %v1556 = vpop.f32.mrf.mxu0
  %1557 = vmatprep.mubr.bf16.mxu0 0
  %1558 = vmatmul.mubr.bf16.gmra.mxu0 %v914
  %v1559 = vpop.f32.mrf.mxu0
  %v1560 = vadd.f32 %v223, %v1559
  %v1561 = vpop.f32.mrf.mxu0
  %v1562 = vpop.f32.mrf.mxu0
  %v1563 = vadd.f32 %v223, %v1562
  %v1564 = vpop.f32.mrf.mxu0
  %1565 = vmatprep.mubr.bf16.mxu0 0
  %1566 = vmatmul.mubr.bf16.gmra.mxu0 %v917
  %v1567 = vpop.f32.mrf.mxu0
  %v1568 = vadd.f32 %v223, %v1567
  %v1569 = vpop.f32.mrf.mxu0
  %v1570 = vpop.f32.mrf.mxu0
  %v1571 = vadd.f32 %v223, %v1570
  %v1572 = vpop.f32.mrf.mxu0
  %1573 = vmatprep.mubr.bf16.mxu0 0
  %1574 = vmatmul.mubr.bf16.gmra.mxu0 %v920
  %v1575 = vpop.f32.mrf.mxu0
  %v1576 = vadd.f32 %v223, %v1575
  %v1577 = vpop.f32.mrf.mxu0
  %v1578 = vpop.f32.mrf.mxu0
  %v1579 = vadd.f32 %v223, %v1578
  %v1580 = vpop.f32.mrf.mxu0
  %1581 = vmatprep.mubr.bf16.mxu0 0
  %1582 = vmatmul.mubr.bf16.gmra.mxu0 %v923
  %v1583 = vpop.f32.mrf.mxu0
  %v1584 = vadd.f32 %v223, %v1583
  %v1585 = vpop.f32.mrf.mxu0
  %v1586 = vpop.f32.mrf.mxu0
  %v1587 = vadd.f32 %v223, %v1586
  %v1588 = vpop.f32.mrf.mxu0
  %1589 = vmatprep.mubr.bf16.mxu0 0
  %1590 = vmatmul.mubr.bf16.gmra.mxu0 %v926
  %v1591 = vpop.f32.mrf.mxu0
  %v1592 = vadd.f32 %v223, %v1591
  %v1593 = vpop.f32.mrf.mxu0
  %v1594 = vpop.f32.mrf.mxu0
  %v1595 = vadd.f32 %v223, %v1594
  %v1596 = vpop.f32.mrf.mxu0
  %1597 = vmatprep.mubr.bf16.mxu0 0
  %1598 = vmatmul.mubr.bf16.gmra.mxu0 %v929
  %v1599 = vpop.f32.mrf.mxu0
  %v1600 = vadd.f32 %v223, %v1599
  %v1601 = vpop.f32.mrf.mxu0
  %v1602 = vpop.f32.mrf.mxu0
  %v1603 = vadd.f32 %v223, %v1602
  %v1604 = vpop.f32.mrf.mxu0
  %1605 = vmatprep.mubr.bf16.mxu0 0
  %1606 = vmatmul.mubr.bf16.gmra.mxu0 %v932
  %v1607 = vpop.f32.mrf.mxu0
  %v1608 = vadd.f32 %v223, %v1607
  %v1609 = vpop.f32.mrf.mxu0
  %v1610 = vpop.f32.mrf.mxu0
  %v1611 = vadd.f32 %v223, %v1610
  %v1612 = vpop.f32.mrf.mxu0
  %1613 = vmatprep.mubr.bf16.mxu0 0
  %1614 = vmatmul.mubr.bf16.gmra.mxu0 %v935
  %v1615 = vpop.f32.mrf.mxu0
  %v1616 = vadd.f32 %v223, %v1615
  %v1617 = vpop.f32.mrf.mxu0
  %v1618 = vpop.f32.mrf.mxu0
  %v1619 = vadd.f32 %v223, %v1618
  %v1620 = vpop.f32.mrf.mxu0
  %1621 = vmatprep.mubr.bf16.mxu0 0
  %1622 = vmatmul.mubr.bf16.gmra.mxu0 %v938
  %v1623 = vpop.f32.mrf.mxu0
  %v1624 = vadd.f32 %v223, %v1623
  %v1625 = vpop.f32.mrf.mxu0
  %v1626 = vpop.f32.mrf.mxu0
  %v1627 = vadd.f32 %v223, %v1626
  %v1628 = vpop.f32.mrf.mxu0
  %1629 = vmatprep.mubr.bf16.mxu0 0
  %1630 = vmatmul.mubr.bf16.gmra.mxu0 %v941
  %v1631 = vpop.f32.mrf.mxu0
  %v1632 = vadd.f32 %v223, %v1631
  %v1633 = vpop.f32.mrf.mxu0
  %v1634 = vpop.f32.mrf.mxu0
  %v1635 = vadd.f32 %v223, %v1634
  %v1636 = vpop.f32.mrf.mxu0
  %1637 = vmatprep.mubr.bf16.mxu0 0
  %1638 = vmatmul.mubr.bf16.gmra.mxu0 %v944
  %v1639 = vpop.f32.mrf.mxu0
  %v1640 = vadd.f32 %v223, %v1639
  %v1641 = vpop.f32.mrf.mxu0
  %v1642 = vpop.f32.mrf.mxu0
  %v1643 = vadd.f32 %v223, %v1642
  %v1644 = vpop.f32.mrf.mxu0
  %1645 = vmatprep.mubr.bf16.mxu0 0
  %1646 = vmatmul.mubr.bf16.gmra.mxu0 %v947
  %v1647 = vpop.f32.mrf.mxu0
  %v1648 = vadd.f32 %v223, %v1647
  %v1649 = vpop.f32.mrf.mxu0
  %v1650 = vpop.f32.mrf.mxu0
  %v1651 = vadd.f32 %v223, %v1650
  %v1652 = vpop.f32.mrf.mxu0
  %1653 = vmatprep.mubr.bf16.mxu0 0
  %1654 = vmatmul.mubr.bf16.gmra.mxu0 %v950
  %v1655 = vpop.f32.mrf.mxu0
  %v1656 = vadd.f32 %v223, %v1655
  %v1657 = vpop.f32.mrf.mxu0
  %v1658 = vpop.f32.mrf.mxu0
  %v1659 = vadd.f32 %v223, %v1658
  %v1660 = vpop.f32.mrf.mxu0
  %1661 = vmatprep.mubr.bf16.mxu0 0
  %1662 = vmatmul.mubr.bf16.gmra.mxu0 %v953
  %v1663 = vpop.f32.mrf.mxu0
  %v1664 = vadd.f32 %v223, %v1663
  %v1665 = vpop.f32.mrf.mxu0
  %v1666 = vpop.f32.mrf.mxu0
  %v1667 = vadd.f32 %v223, %v1666
  %v1668 = vpop.f32.mrf.mxu0
  %1669 = vmatprep.mubr.bf16.mxu0 0
  %1670 = vmatmul.mubr.bf16.gmra.mxu0 %v956
  %v1671 = vpop.f32.mrf.mxu0
  %v1672 = vadd.f32 %v223, %v1671
  %v1673 = vpop.f32.mrf.mxu0
  %v1674 = vpop.f32.mrf.mxu0
  %v1675 = vadd.f32 %v223, %v1674
  %v1676 = vpop.f32.mrf.mxu0
  %1677 = vmatprep.mubr.bf16.mxu0 0
  %1678 = vmatmul.mubr.bf16.gmra.mxu0 %v959
  %v1679 = vpop.f32.mrf.mxu0
  %v1680 = vadd.f32 %v223, %v1679
  %v1681 = vpop.f32.mrf.mxu0
  %v1682 = vpop.f32.mrf.mxu0
  %v1683 = vadd.f32 %v223, %v1682
  %v1684 = vpop.f32.mrf.mxu0
  %1685 = vmatprep.mubr.bf16.mxu0 0
  %1686 = vmatmul.mubr.bf16.gmra.mxu0 %v962
  %v1687 = vpop.f32.mrf.mxu0
  %v1688 = vadd.f32 %v223, %v1687
  %v1689 = vpop.f32.mrf.mxu0
  %v1690 = vpop.f32.mrf.mxu0
  %v1691 = vadd.f32 %v223, %v1690
  %v1692 = vpop.f32.mrf.mxu0
  %1693 = vmatprep.mubr.bf16.mxu0 0
  %1694 = vmatmul.mubr.bf16.gmra.mxu0 %v965
  %v1695 = vpop.f32.mrf.mxu0
  %v1696 = vadd.f32 %v223, %v1695
  %v1697 = vpop.f32.mrf.mxu0
  %v1698 = vpop.f32.mrf.mxu0
  %v1699 = vadd.f32 %v223, %v1698
  %v1700 = vpop.f32.mrf.mxu0
  %1701 = vmatprep.mubr.bf16.mxu0 0
  %1702 = vmatmul.mubr.bf16.gmra.mxu0 %v968
  %v1703 = vpop.f32.mrf.mxu0
  %v1704 = vadd.f32 %v223, %v1703
  %v1705 = vpop.f32.mrf.mxu0
  %v1706 = vpop.f32.mrf.mxu0
  %v1707 = vadd.f32 %v223, %v1706
  %v1708 = vpop.f32.mrf.mxu0
  %1709 = vmatprep.mubr.bf16.mxu0 0
  %1710 = vmatmul.mubr.bf16.gmra.mxu0 %v971
  %v1711 = vpop.f32.mrf.mxu0
  %v1712 = vadd.f32 %v223, %v1711
  %v1713 = vpop.f32.mrf.mxu0
  %v1714 = vpop.f32.mrf.mxu0
  %v1715 = vadd.f32 %v223, %v1714
  %v1716 = vpop.f32.mrf.mxu0
  %1717 = vmatprep.mubr.bf16.mxu0 0
  %1718 = vmatmul.mubr.bf16.gmra.mxu0 %v974
  %v1719 = vpop.f32.mrf.mxu0
  %v1720 = vadd.f32 %v223, %v1719
  %v1721 = vpop.f32.mrf.mxu0
  %v1722 = vpop.f32.mrf.mxu0
  %v1723 = vadd.f32 %v223, %v1722
  %v1724 = vpop.f32.mrf.mxu0
  %1725 = vmatprep.mubr.bf16.mxu0 0
  %1726 = vmatmul.mubr.bf16.gmra.mxu0 %v977
  %v1727 = vpop.f32.mrf.mxu0
  %v1728 = vadd.f32 %v223, %v1727
  %v1729 = vpop.f32.mrf.mxu0
  %v1730 = vpop.f32.mrf.mxu0
  %v1731 = vadd.f32 %v223, %v1730
  %v1732 = vpop.f32.mrf.mxu0
  %1733 = vmatprep.mubr.bf16.mxu0 0
  %1734 = vmatmul.mubr.bf16.gmra.mxu0 %v980
  %v1735 = vpop.f32.mrf.mxu0
  %v1736 = vadd.f32 %v223, %v1735
  %v1737 = vpop.f32.mrf.mxu0
  %v1738 = vpop.f32.mrf.mxu0
  %v1739 = vadd.f32 %v223, %v1738
  %v1740 = vpop.f32.mrf.mxu0
  %1741 = vmatprep.mubr.bf16.mxu0 0
  %1742 = vmatmul.mubr.bf16.gmra.mxu0 %v983
  %v1743 = vpop.f32.mrf.mxu0
  %v1744 = vadd.f32 %v223, %v1743
  %v1745 = vpop.f32.mrf.mxu0
  %v1746 = vpop.f32.mrf.mxu0
  %v1747 = vadd.f32 %v223, %v1746
  %v1748 = vpop.f32.mrf.mxu0
  %1749 = vmatprep.mubr.bf16.mxu0 0
  %1750 = vmatmul.mubr.bf16.gmra.mxu0 %v986
  %v1751 = vpop.f32.mrf.mxu0
  %v1752 = vadd.f32 %v223, %v1751
  %v1753 = vpop.f32.mrf.mxu0
  %v1754 = vpop.f32.mrf.mxu0
  %v1755 = vadd.f32 %v223, %v1754
  %v1756 = vpop.f32.mrf.mxu0
  %1757 = vmatprep.mubr.bf16.mxu0 0
  %1758 = vmatmul.mubr.bf16.gmra.mxu0 %v989
  %v1759 = vpop.f32.mrf.mxu0
  %v1760 = vadd.f32 %v223, %v1759
  %v1761 = vpop.f32.mrf.mxu0
  %v1762 = vpop.f32.mrf.mxu0
  %v1763 = vadd.f32 %v223, %v1762
  %v1764 = vpop.f32.mrf.mxu0
  %1765 = vmatprep.mubr.bf16.mxu0 0
  %1766 = vmatmul.mubr.bf16.gmra.mxu0 %v992
  %v1767 = vpop.f32.mrf.mxu0
  %v1768 = vadd.f32 %v223, %v1767
  %v1769 = vpop.f32.mrf.mxu0
  %v1770 = vpop.f32.mrf.mxu0
  %v1771 = vadd.f32 %v223, %v1770
  %v1772 = vpop.f32.mrf.mxu0
  %1773 = vmatprep.mubr.bf16.mxu0 0
  %1774 = vmatmul.mubr.bf16.gmra.mxu0 %v995
  %v1775 = vpop.f32.mrf.mxu0
  %v1776 = vadd.f32 %v223, %v1775
  %v1777 = vpop.f32.mrf.mxu0
  %v1778 = vpop.f32.mrf.mxu0
  %v1779 = vadd.f32 %v223, %v1778
  %v1780 = vpop.f32.mrf.mxu0
  %1781 = vmatprep.mubr.bf16.mxu0 0
  %1782 = vmatmul.mubr.bf16.gmra.mxu0 %v998
  %v1783 = vpop.f32.mrf.mxu0
  %v1784 = vadd.f32 %v223, %v1783
  %v1785 = vpop.f32.mrf.mxu0
  %v1786 = vpop.f32.mrf.mxu0
  %v1787 = vadd.f32 %v223, %v1786
  %v1788 = vpop.f32.mrf.mxu0
  %1789 = vmatprep.mubr.bf16.mxu0 0
  %1790 = vmatmul.mubr.bf16.gmra.mxu0 %v1001
  %v1791 = vpop.f32.mrf.mxu0
  %v1792 = vadd.f32 %v223, %v1791
  %v1793 = vpop.f32.mrf.mxu0
  %v1794 = vpop.f32.mrf.mxu0
  %v1795 = vadd.f32 %v223, %v1794
  %v1796 = vpop.f32.mrf.mxu0
  %1797 = vmatprep.mubr.bf16.mxu0 0
  %1798 = vmatmul.mubr.bf16.gmra.mxu0 %v1004
  %v1799 = vpop.f32.mrf.mxu0
  %v1800 = vadd.f32 %v223, %v1799
  %v1801 = vpop.f32.mrf.mxu0
  %v1802 = vpop.f32.mrf.mxu0
  %v1803 = vadd.f32 %v223, %v1802
  %v1804 = vpop.f32.mrf.mxu0
  %1805 = vmatprep.mubr.bf16.mxu0 0
  %1806 = vmatmul.mubr.bf16.gmra.mxu0 %v1007
  %v1807 = vpop.f32.mrf.mxu0
  %v1808 = vadd.f32 %v223, %v1807
  %v1809 = vpop.f32.mrf.mxu0
  %v1810 = vpop.f32.mrf.mxu0
  %v1811 = vadd.f32 %v223, %v1810
  %v1812 = vpop.f32.mrf.mxu0
  %1813 = vdwg.mxu0
  %v1814 = vmax.f32 %v1048, 0.0
  %v1815 = vmax.f32 %v1051, 0.0
  %v1816 = vmax.f32 %v1056, 0.0
  %v1817 = vmax.f32 %v1059, 0.0
  %v1818 = vmax.f32 %v1064, 0.0
  %v1819 = vmax.f32 %v1067, 0.0
  %v1820 = vmax.f32 %v1072, 0.0
  %v1821 = vmax.f32 %v1075, 0.0
  %v1822 = vmax.f32 %v1080, 0.0
  %v1823 = vmax.f32 %v1083, 0.0
  %v1824 = vmax.f32 %v1088, 0.0
  %v1825 = vmax.f32 %v1091, 0.0
  %v1826 = vmax.f32 %v1096, 0.0
  %v1827 = vmax.f32 %v1099, 0.0
  %v1828 = vmax.f32 %v1104, 0.0
  %v1829 = vmax.f32 %v1107, 0.0
  %v1830 = vmax.f32 %v1112, 0.0
  %v1831 = vmax.f32 %v1115, 0.0
  %v1832 = vmax.f32 %v1120, 0.0
  %v1833 = vmax.f32 %v1123, 0.0
  %v1834 = vmax.f32 %v1128, 0.0
  %v1835 = vmax.f32 %v1131, 0.0
  %v1836 = vmax.f32 %v1136, 0.0
  %v1837 = vmax.f32 %v1139, 0.0
  %v1838 = vmax.f32 %v1144, 0.0
  %v1839 = vmax.f32 %v1147, 0.0
  %v1840 = vmax.f32 %v1152, 0.0
  %v1841 = vmax.f32 %v1155, 0.0
  %v1842 = vmax.f32 %v1160, 0.0
  %v1843 = vmax.f32 %v1163, 0.0
  %v1844 = vmax.f32 %v1168, 0.0
  %v1845 = vmax.f32 %v1171, 0.0
  %v1846 = vmax.f32 %v1176, 0.0
  %v1847 = vmax.f32 %v1179, 0.0
  %v1848 = vmax.f32 %v1184, 0.0
  %v1849 = vmax.f32 %v1187, 0.0
  %v1850 = vmax.f32 %v1192, 0.0
  %v1851 = vmax.f32 %v1195, 0.0
  %v1852 = vmax.f32 %v1200, 0.0
  %v1853 = vmax.f32 %v1203, 0.0
  %v1854 = vmax.f32 %v1208, 0.0
  %v1855 = vmax.f32 %v1211, 0.0
  %v1856 = vmax.f32 %v1216, 0.0
  %v1857 = vmax.f32 %v1219, 0.0
  %v1858 = vmax.f32 %v1224, 0.0
  %v1859 = vmax.f32 %v1227, 0.0
  %v1860 = vmax.f32 %v1232, 0.0
  %v1861 = vmax.f32 %v1235, 0.0
  %v1862 = vmax.f32 %v1240, 0.0
  %v1863 = vmax.f32 %v1243, 0.0
  %v1864 = vmax.f32 %v1248, 0.0
  %v1865 = vmax.f32 %v1251, 0.0
  %v1866 = vmax.f32 %v1256, 0.0
  %v1867 = vmax.f32 %v1259, 0.0
  %v1868 = vmax.f32 %v1264, 0.0
  %v1869 = vmax.f32 %v1267, 0.0
  %v1870 = vmax.f32 %v1272, 0.0
  %v1871 = vmax.f32 %v1275, 0.0
  %v1872 = vmax.f32 %v1280, 0.0
  %v1873 = vmax.f32 %v1283, 0.0
  %v1874 = vmax.f32 %v1288, 0.0
  %v1875 = vmax.f32 %v1291, 0.0
  %v1876 = vmax.f32 %v1296, 0.0
  %v1877 = vmax.f32 %v1299, 0.0
  %v1878 = vmax.f32 %v1304, 0.0
  %v1879 = vmax.f32 %v1307, 0.0
  %v1880 = vmax.f32 %v1312, 0.0
  %v1881 = vmax.f32 %v1315, 0.0
  %v1882 = vmax.f32 %v1320, 0.0
  %v1883 = vmax.f32 %v1323, 0.0
  %v1884 = vmax.f32 %v1328, 0.0
  %v1885 = vmax.f32 %v1331, 0.0
  %v1886 = vmax.f32 %v1336, 0.0
  %v1887 = vmax.f32 %v1339, 0.0
  %v1888 = vmax.f32 %v1344, 0.0
  %v1889 = vmax.f32 %v1347, 0.0
  %v1890 = vmax.f32 %v1352, 0.0
  %v1891 = vmax.f32 %v1355, 0.0
  %v1892 = vmax.f32 %v1360, 0.0
  %v1893 = vmax.f32 %v1363, 0.0
  %v1894 = vmax.f32 %v1368, 0.0
  %v1895 = vmax.f32 %v1371, 0.0
  %v1896 = vmax.f32 %v1376, 0.0
  %v1897 = vmax.f32 %v1379, 0.0
  %v1898 = vmax.f32 %v1384, 0.0
  %v1899 = vmax.f32 %v1387, 0.0
  %v1900 = vmax.f32 %v1392, 0.0
  %v1901 = vmax.f32 %v1395, 0.0
  %v1902 = vmax.f32 %v1400, 0.0
  %v1903 = vmax.f32 %v1403, 0.0
  %v1904 = vmax.f32 %v1408, 0.0
  %v1905 = vmax.f32 %v1411, 0.0
  %v1906 = vmax.f32 %v1416, 0.0
  %v1907 = vmax.f32 %v1419, 0.0
  %v1908 = vmax.f32 %v1424, 0.0
  %v1909 = vmax.f32 %v1427, 0.0
  %v1910 = vmax.f32 %v1432, 0.0
  %v1911 = vmax.f32 %v1435, 0.0
  %v1912 = vmax.f32 %v1440, 0.0
  %v1913 = vmax.f32 %v1443, 0.0
  %v1914 = vmax.f32 %v1448, 0.0
  %v1915 = vmax.f32 %v1451, 0.0
  %v1916 = vmax.f32 %v1456, 0.0
  %v1917 = vmax.f32 %v1459, 0.0
  %v1918 = vmax.f32 %v1464, 0.0
  %v1919 = vmax.f32 %v1467, 0.0
  %v1920 = vmax.f32 %v1472, 0.0
  %v1921 = vmax.f32 %v1475, 0.0
  %v1922 = vmax.f32 %v1480, 0.0
  %v1923 = vmax.f32 %v1483, 0.0
  %v1924 = vmax.f32 %v1488, 0.0
  %v1925 = vmax.f32 %v1491, 0.0
  %v1926 = vmax.f32 %v1496, 0.0
  %v1927 = vmax.f32 %v1499, 0.0
  %v1928 = vmax.f32 %v1504, 0.0
  %v1929 = vmax.f32 %v1507, 0.0
  %v1930 = vmax.f32 %v1512, 0.0
  %v1931 = vmax.f32 %v1515, 0.0
  %v1932 = vmax.f32 %v1520, 0.0
  %v1933 = vmax.f32 %v1523, 0.0
  %v1934 = vmax.f32 %v1528, 0.0
  %v1935 = vmax.f32 %v1531, 0.0
  %v1936 = vmax.f32 %v1536, 0.0
  %v1937 = vmax.f32 %v1539, 0.0
  %v1938 = vmax.f32 %v1544, 0.0
  %v1939 = vmax.f32 %v1547, 0.0
  %v1940 = vmax.f32 %v1552, 0.0
  %v1941 = vmax.f32 %v1555, 0.0
  %v1942 = vmax.f32 %v1560, 0.0
  %v1943 = vmax.f32 %v1563, 0.0
  %v1944 = vmax.f32 %v1568, 0.0
  %v1945 = vmax.f32 %v1571, 0.0
  %v1946 = vmax.f32 %v1576, 0.0
  %v1947 = vmax.f32 %v1579, 0.0
  %v1948 = vmax.f32 %v1584, 0.0
  %v1949 = vmax.f32 %v1587, 0.0
  %v1950 = vmax.f32 %v1592, 0.0
  %v1951 = vmax.f32 %v1595, 0.0
  %v1952 = vmax.f32 %v1600, 0.0
  %v1953 = vmax.f32 %v1603, 0.0
  %v1954 = vmax.f32 %v1608, 0.0
  %v1955 = vmax.f32 %v1611, 0.0
  %v1956 = vmax.f32 %v1616, 0.0
  %v1957 = vmax.f32 %v1619, 0.0
  %v1958 = vmax.f32 %v1624, 0.0
  %v1959 = vmax.f32 %v1627, 0.0
  %v1960 = vmax.f32 %v1632, 0.0
  %v1961 = vmax.f32 %v1635, 0.0
  %v1962 = vmax.f32 %v1640, 0.0
  %v1963 = vmax.f32 %v1643, 0.0
  %v1964 = vmax.f32 %v1648, 0.0
  %v1965 = vmax.f32 %v1651, 0.0
  %v1966 = vmax.f32 %v1656, 0.0
  %v1967 = vmax.f32 %v1659, 0.0
  %v1968 = vmax.f32 %v1664, 0.0
  %v1969 = vmax.f32 %v1667, 0.0
  %v1970 = vmax.f32 %v1672, 0.0
  %v1971 = vmax.f32 %v1675, 0.0
  %v1972 = vmax.f32 %v1680, 0.0
  %v1973 = vmax.f32 %v1683, 0.0
  %v1974 = vmax.f32 %v1688, 0.0
  %v1975 = vmax.f32 %v1691, 0.0
  %v1976 = vmax.f32 %v1696, 0.0
  %v1977 = vmax.f32 %v1699, 0.0
  %v1978 = vmax.f32 %v1704, 0.0
  %v1979 = vmax.f32 %v1707, 0.0
  %v1980 = vmax.f32 %v1712, 0.0
  %v1981 = vmax.f32 %v1715, 0.0
  %v1982 = vmax.f32 %v1720, 0.0
  %v1983 = vmax.f32 %v1723, 0.0
  %v1984 = vmax.f32 %v1728, 0.0
  %v1985 = vmax.f32 %v1731, 0.0
  %v1986 = vmax.f32 %v1736, 0.0
  %v1987 = vmax.f32 %v1739, 0.0
  %v1988 = vmax.f32 %v1744, 0.0
  %v1989 = vmax.f32 %v1747, 0.0
  %v1990 = vmax.f32 %v1752, 0.0
  %v1991 = vmax.f32 %v1755, 0.0
  %v1992 = vmax.f32 %v1760, 0.0
  %v1993 = vmax.f32 %v1763, 0.0
  %v1994 = vmax.f32 %v1768, 0.0
  %v1995 = vmax.f32 %v1771, 0.0
  %v1996 = vmax.f32 %v1776, 0.0
  %v1997 = vmax.f32 %v1779, 0.0
  %v1998 = vmax.f32 %v1784, 0.0
  %v1999 = vmax.f32 %v1787, 0.0
  %v2000 = vmax.f32 %v1792, 0.0
  %v2001 = vmax.f32 %v1795, 0.0
  %v2002 = vmax.f32 %v1800, 0.0
  %v2003 = vmax.f32 %v1803, 0.0
  %v2004 = vmax.f32 %v1808, 0.0
  %v2005 = vmax.f32 %v1811, 0.0
  %vm2006 = vcmask 261120
  %v2007 = vsel %vm2006, %v1814, 0.0
  %v2008 = vsel %vm2006, %v1815, 0.0
  %v2009 = vadd.f32 %v2007, %v2008
  %v2010 = vsel %vm2006, %v1816, 0.0
  %v2011 = vadd.f32 %v2009, %v2010
  %v2012 = vsel %vm2006, %v1817, 0.0
  %v2013 = vadd.f32 %v2011, %v2012
  %v2014 = vsel %vm2006, %v1818, 0.0
  %v2015 = vadd.f32 %v2013, %v2014
  %v2016 = vsel %vm2006, %v1819, 0.0
  %v2017 = vadd.f32 %v2015, %v2016
  %v2018 = vsel %vm2006, %v1820, 0.0
  %v2019 = vadd.f32 %v2017, %v2018
  %v2020 = vsel %vm2006, %v1821, 0.0
  %v2021 = vadd.f32 %v2019, %v2020
  %v2022 = vsel %vm2006, %v1822, 0.0
  %v2023 = vadd.f32 %v2021, %v2022
  %v2024 = vsel %vm2006, %v1823, 0.0
  %v2025 = vadd.f32 %v2023, %v2024
  %v2026 = vsel %vm2006, %v1824, 0.0
  %v2027 = vadd.f32 %v2025, %v2026
  %v2028 = vsel %vm2006, %v1825, 0.0
  %v2029 = vadd.f32 %v2027, %v2028
  %v2030 = vsel %vm2006, %v1826, 0.0
  %v2031 = vadd.f32 %v2029, %v2030
  %v2032 = vsel %vm2006, %v1827, 0.0
  %v2033 = vadd.f32 %v2031, %v2032
  %v2034 = vsel %vm2006, %v1828, 0.0
  %v2035 = vadd.f32 %v2033, %v2034
  %v2036 = vsel %vm2006, %v1829, 0.0
  %v2037 = vadd.f32 %v2035, %v2036
  %v2038 = vsel %vm2006, %v1830, 0.0
  %v2039 = vadd.f32 %v2037, %v2038
  %v2040 = vsel %vm2006, %v1831, 0.0
  %v2041 = vadd.f32 %v2039, %v2040
  %v2042 = vsel %vm2006, %v1832, 0.0
  %v2043 = vadd.f32 %v2041, %v2042
  %v2044 = vsel %vm2006, %v1833, 0.0
  %v2045 = vadd.f32 %v2043, %v2044
  %v2046 = vsel %vm2006, %v1834, 0.0
  %v2047 = vadd.f32 %v2045, %v2046
  %v2048 = vsel %vm2006, %v1835, 0.0
  %v2049 = vadd.f32 %v2047, %v2048
  %v2050 = vsel %vm2006, %v1836, 0.0
  %v2051 = vadd.f32 %v2049, %v2050
  %v2052 = vsel %vm2006, %v1837, 0.0
  %v2053 = vadd.f32 %v2051, %v2052
  %v2054 = vsel %vm2006, %v1838, 0.0
  %v2055 = vadd.f32 %v2053, %v2054
  %v2056 = vsel %vm2006, %v1839, 0.0
  %v2057 = vadd.f32 %v2055, %v2056
  %v2058 = vsel %vm2006, %v1840, 0.0
  %v2059 = vadd.f32 %v2057, %v2058
  %v2060 = vsel %vm2006, %v1841, 0.0
  %v2061 = vadd.f32 %v2059, %v2060
  %v2062 = vsel %vm2006, %v1842, 0.0
  %v2063 = vadd.f32 %v2061, %v2062
  %v2064 = vsel %vm2006, %v1843, 0.0
  %v2065 = vadd.f32 %v2063, %v2064
  %v2066 = vsel %vm2006, %v1844, 0.0
  %v2067 = vadd.f32 %v2065, %v2066
  %v2068 = vsel %vm2006, %v1845, 0.0
  %v2069 = vadd.f32 %v2067, %v2068
  %v2070 = vrot.slane %v2069, 4
  %v2071 = vadd.f32 %v2069, %v2070
  %v2072 = vrot.slane %v2071, 2
  %v2073 = vadd.f32 %v2071, %v2072
  %v2074 = vrot.slane %v2073, 1
  %v2075 = vadd.f32 %v2073, %v2074
  %v2076 = vsel %vm2006, %v1846, 0.0
  %v2077 = vsel %vm2006, %v1847, 0.0
  %v2078 = vadd.f32 %v2076, %v2077
  %v2079 = vsel %vm2006, %v1848, 0.0
  %v2080 = vadd.f32 %v2078, %v2079
  %v2081 = vsel %vm2006, %v1849, 0.0
  %v2082 = vadd.f32 %v2080, %v2081
  %v2083 = vsel %vm2006, %v1850, 0.0
  %v2084 = vadd.f32 %v2082, %v2083
  %v2085 = vsel %vm2006, %v1851, 0.0
  %v2086 = vadd.f32 %v2084, %v2085
  %v2087 = vsel %vm2006, %v1852, 0.0
  %v2088 = vadd.f32 %v2086, %v2087
  %v2089 = vsel %vm2006, %v1853, 0.0
  %v2090 = vadd.f32 %v2088, %v2089
  %v2091 = vsel %vm2006, %v1854, 0.0
  %v2092 = vadd.f32 %v2090, %v2091
  %v2093 = vsel %vm2006, %v1855, 0.0
  %v2094 = vadd.f32 %v2092, %v2093
  %v2095 = vsel %vm2006, %v1856, 0.0
  %v2096 = vadd.f32 %v2094, %v2095
  %v2097 = vsel %vm2006, %v1857, 0.0
  %v2098 = vadd.f32 %v2096, %v2097
  %v2099 = vsel %vm2006, %v1858, 0.0
  %v2100 = vadd.f32 %v2098, %v2099
  %v2101 = vsel %vm2006, %v1859, 0.0
  %v2102 = vadd.f32 %v2100, %v2101
  %v2103 = vsel %vm2006, %v1860, 0.0
  %v2104 = vadd.f32 %v2102, %v2103
  %v2105 = vsel %vm2006, %v1861, 0.0
  %v2106 = vadd.f32 %v2104, %v2105
  %v2107 = vsel %vm2006, %v1862, 0.0
  %v2108 = vadd.f32 %v2106, %v2107
  %v2109 = vsel %vm2006, %v1863, 0.0
  %v2110 = vadd.f32 %v2108, %v2109
  %v2111 = vsel %vm2006, %v1864, 0.0
  %v2112 = vadd.f32 %v2110, %v2111
  %v2113 = vsel %vm2006, %v1865, 0.0
  %v2114 = vadd.f32 %v2112, %v2113
  %v2115 = vsel %vm2006, %v1866, 0.0
  %v2116 = vadd.f32 %v2114, %v2115
  %v2117 = vsel %vm2006, %v1867, 0.0
  %v2118 = vadd.f32 %v2116, %v2117
  %v2119 = vsel %vm2006, %v1868, 0.0
  %v2120 = vadd.f32 %v2118, %v2119
  %v2121 = vsel %vm2006, %v1869, 0.0
  %v2122 = vadd.f32 %v2120, %v2121
  %v2123 = vsel %vm2006, %v1870, 0.0
  %v2124 = vadd.f32 %v2122, %v2123
  %v2125 = vsel %vm2006, %v1871, 0.0
  %v2126 = vadd.f32 %v2124, %v2125
  %v2127 = vsel %vm2006, %v1872, 0.0
  %v2128 = vadd.f32 %v2126, %v2127
  %v2129 = vsel %vm2006, %v1873, 0.0
  %v2130 = vadd.f32 %v2128, %v2129
  %v2131 = vsel %vm2006, %v1874, 0.0
  %v2132 = vadd.f32 %v2130, %v2131
  %v2133 = vsel %vm2006, %v1875, 0.0
  %v2134 = vadd.f32 %v2132, %v2133
  %v2135 = vsel %vm2006, %v1876, 0.0
  %v2136 = vadd.f32 %v2134, %v2135
  %v2137 = vsel %vm2006, %v1877, 0.0
  %v2138 = vadd.f32 %v2136, %v2137
  %v2139 = vrot.slane %v2138, 4
  %v2140 = vadd.f32 %v2138, %v2139
  %v2141 = vrot.slane %v2140, 2
  %v2142 = vadd.f32 %v2140, %v2141
  %v2143 = vrot.slane %v2142, 1
  %v2144 = vadd.f32 %v2142, %v2143
  %v2145 = vsel %vm2006, %v1878, 0.0
  %v2146 = vsel %vm2006, %v1879, 0.0
  %v2147 = vadd.f32 %v2145, %v2146
  %v2148 = vsel %vm2006, %v1880, 0.0
  %v2149 = vadd.f32 %v2147, %v2148
  %v2150 = vsel %vm2006, %v1881, 0.0
  %v2151 = vadd.f32 %v2149, %v2150
  %v2152 = vsel %vm2006, %v1882, 0.0
  %v2153 = vadd.f32 %v2151, %v2152
  %v2154 = vsel %vm2006, %v1883, 0.0
  %v2155 = vadd.f32 %v2153, %v2154
  %v2156 = vsel %vm2006, %v1884, 0.0
  %v2157 = vadd.f32 %v2155, %v2156
  %v2158 = vsel %vm2006, %v1885, 0.0
  %v2159 = vadd.f32 %v2157, %v2158
  %v2160 = vsel %vm2006, %v1886, 0.0
  %v2161 = vadd.f32 %v2159, %v2160
  %v2162 = vsel %vm2006, %v1887, 0.0
  %v2163 = vadd.f32 %v2161, %v2162
  %v2164 = vsel %vm2006, %v1888, 0.0
  %v2165 = vadd.f32 %v2163, %v2164
  %v2166 = vsel %vm2006, %v1889, 0.0
  %v2167 = vadd.f32 %v2165, %v2166
  %v2168 = vsel %vm2006, %v1890, 0.0
  %v2169 = vadd.f32 %v2167, %v2168
  %v2170 = vsel %vm2006, %v1891, 0.0
  %v2171 = vadd.f32 %v2169, %v2170
  %v2172 = vsel %vm2006, %v1892, 0.0
  %v2173 = vadd.f32 %v2171, %v2172
  %v2174 = vsel %vm2006, %v1893, 0.0
  %v2175 = vadd.f32 %v2173, %v2174
  %v2176 = vsel %vm2006, %v1894, 0.0
  %v2177 = vadd.f32 %v2175, %v2176
  %v2178 = vsel %vm2006, %v1895, 0.0
  %v2179 = vadd.f32 %v2177, %v2178
  %v2180 = vsel %vm2006, %v1896, 0.0
  %v2181 = vadd.f32 %v2179, %v2180
  %v2182 = vsel %vm2006, %v1897, 0.0
  %v2183 = vadd.f32 %v2181, %v2182
  %v2184 = vsel %vm2006, %v1898, 0.0
  %v2185 = vadd.f32 %v2183, %v2184
  %v2186 = vsel %vm2006, %v1899, 0.0
  %v2187 = vadd.f32 %v2185, %v2186
  %v2188 = vsel %vm2006, %v1900, 0.0
  %v2189 = vadd.f32 %v2187, %v2188
  %v2190 = vsel %vm2006, %v1901, 0.0
  %v2191 = vadd.f32 %v2189, %v2190
  %v2192 = vsel %vm2006, %v1902, 0.0
  %v2193 = vadd.f32 %v2191, %v2192
  %v2194 = vsel %vm2006, %v1903, 0.0
  %v2195 = vadd.f32 %v2193, %v2194
  %v2196 = vsel %vm2006, %v1904, 0.0
  %v2197 = vadd.f32 %v2195, %v2196
  %v2198 = vsel %vm2006, %v1905, 0.0
  %v2199 = vadd.f32 %v2197, %v2198
  %v2200 = vsel %vm2006, %v1906, 0.0
  %v2201 = vadd.f32 %v2199, %v2200
  %v2202 = vsel %vm2006, %v1907, 0.0
  %v2203 = vadd.f32 %v2201, %v2202
  %v2204 = vsel %vm2006, %v1908, 0.0
  %v2205 = vadd.f32 %v2203, %v2204
  %v2206 = vsel %vm2006, %v1909, 0.0
  %v2207 = vadd.f32 %v2205, %v2206
  %v2208 = vrot.slane %v2207, 4
  %v2209 = vadd.f32 %v2207, %v2208
  %v2210 = vrot.slane %v2209, 2
  %v2211 = vadd.f32 %v2209, %v2210
  %v2212 = vrot.slane %v2211, 1
  %v2213 = vadd.f32 %v2211, %v2212
  %v2214 = vsel %vm2006, %v1910, 0.0
  %v2215 = vsel %vm2006, %v1911, 0.0
  %v2216 = vadd.f32 %v2214, %v2215
  %v2217 = vsel %vm2006, %v1912, 0.0
  %v2218 = vadd.f32 %v2216, %v2217
  %v2219 = vsel %vm2006, %v1913, 0.0
  %v2220 = vadd.f32 %v2218, %v2219
  %v2221 = vsel %vm2006, %v1914, 0.0
  %v2222 = vadd.f32 %v2220, %v2221
  %v2223 = vsel %vm2006, %v1915, 0.0
  %v2224 = vadd.f32 %v2222, %v2223
  %v2225 = vsel %vm2006, %v1916, 0.0
  %v2226 = vadd.f32 %v2224, %v2225
  %v2227 = vsel %vm2006, %v1917, 0.0
  %v2228 = vadd.f32 %v2226, %v2227
  %v2229 = vsel %vm2006, %v1918, 0.0
  %v2230 = vadd.f32 %v2228, %v2229
  %v2231 = vsel %vm2006, %v1919, 0.0
  %v2232 = vadd.f32 %v2230, %v2231
  %v2233 = vsel %vm2006, %v1920, 0.0
  %v2234 = vadd.f32 %v2232, %v2233
  %v2235 = vsel %vm2006, %v1921, 0.0
  %v2236 = vadd.f32 %v2234, %v2235
  %v2237 = vsel %vm2006, %v1922, 0.0
  %v2238 = vadd.f32 %v2236, %v2237
  %v2239 = vsel %vm2006, %v1923, 0.0
  %v2240 = vadd.f32 %v2238, %v2239
  %v2241 = vsel %vm2006, %v1924, 0.0
  %v2242 = vadd.f32 %v2240, %v2241
  %v2243 = vsel %vm2006, %v1925, 0.0
  %v2244 = vadd.f32 %v2242, %v2243
  %v2245 = vsel %vm2006, %v1926, 0.0
  %v2246 = vadd.f32 %v2244, %v2245
  %v2247 = vsel %vm2006, %v1927, 0.0
  %v2248 = vadd.f32 %v2246, %v2247
  %v2249 = vsel %vm2006, %v1928, 0.0
  %v2250 = vadd.f32 %v2248, %v2249
  %v2251 = vsel %vm2006, %v1929, 0.0
  %v2252 = vadd.f32 %v2250, %v2251
  %v2253 = vsel %vm2006, %v1930, 0.0
  %v2254 = vadd.f32 %v2252, %v2253
  %v2255 = vsel %vm2006, %v1931, 0.0
  %v2256 = vadd.f32 %v2254, %v2255
  %v2257 = vsel %vm2006, %v1932, 0.0
  %v2258 = vadd.f32 %v2256, %v2257
  %v2259 = vsel %vm2006, %v1933, 0.0
  %v2260 = vadd.f32 %v2258, %v2259
  %v2261 = vsel %vm2006, %v1934, 0.0
  %v2262 = vadd.f32 %v2260, %v2261
  %v2263 = vsel %vm2006, %v1935, 0.0
  %v2264 = vadd.f32 %v2262, %v2263
  %v2265 = vsel %vm2006, %v1936, 0.0
  %v2266 = vadd.f32 %v2264, %v2265
  %v2267 = vsel %vm2006, %v1937, 0.0
  %v2268 = vadd.f32 %v2266, %v2267
  %v2269 = vsel %vm2006, %v1938, 0.0
  %v2270 = vadd.f32 %v2268, %v2269
  %v2271 = vsel %vm2006, %v1939, 0.0
  %v2272 = vadd.f32 %v2270, %v2271
  %v2273 = vsel %vm2006, %v1940, 0.0
  %v2274 = vadd.f32 %v2272, %v2273
  %v2275 = vsel %vm2006, %v1941, 0.0
  %v2276 = vadd.f32 %v2274, %v2275
  %v2277 = vrot.slane %v2276, 4
  %v2278 = vadd.f32 %v2276, %v2277
  %v2279 = vrot.slane %v2278, 2
  %v2280 = vadd.f32 %v2278, %v2279
  %v2281 = vrot.slane %v2280, 1
  %v2282 = vadd.f32 %v2280, %v2281
  %v2283 = vsel %vm2006, %v1942, 0.0
  %v2284 = vsel %vm2006, %v1943, 0.0
  %v2285 = vadd.f32 %v2283, %v2284
  %v2286 = vsel %vm2006, %v1944, 0.0
  %v2287 = vadd.f32 %v2285, %v2286
  %v2288 = vsel %vm2006, %v1945, 0.0
  %v2289 = vadd.f32 %v2287, %v2288
  %v2290 = vsel %vm2006, %v1946, 0.0
  %v2291 = vadd.f32 %v2289, %v2290
  %v2292 = vsel %vm2006, %v1947, 0.0
  %v2293 = vadd.f32 %v2291, %v2292
  %v2294 = vsel %vm2006, %v1948, 0.0
  %v2295 = vadd.f32 %v2293, %v2294
  %v2296 = vsel %vm2006, %v1949, 0.0
  %v2297 = vadd.f32 %v2295, %v2296
  %v2298 = vsel %vm2006, %v1950, 0.0
  %v2299 = vadd.f32 %v2297, %v2298
  %v2300 = vsel %vm2006, %v1951, 0.0
  %v2301 = vadd.f32 %v2299, %v2300
  %v2302 = vsel %vm2006, %v1952, 0.0
  %v2303 = vadd.f32 %v2301, %v2302
  %v2304 = vsel %vm2006, %v1953, 0.0
  %v2305 = vadd.f32 %v2303, %v2304
  %v2306 = vsel %vm2006, %v1954, 0.0
  %v2307 = vadd.f32 %v2305, %v2306
  %v2308 = vsel %vm2006, %v1955, 0.0
  %v2309 = vadd.f32 %v2307, %v2308
  %v2310 = vsel %vm2006, %v1956, 0.0
  %v2311 = vadd.f32 %v2309, %v2310
  %v2312 = vsel %vm2006, %v1957, 0.0
  %v2313 = vadd.f32 %v2311, %v2312
  %v2314 = vsel %vm2006, %v1958, 0.0
  %v2315 = vadd.f32 %v2313, %v2314
  %v2316 = vsel %vm2006, %v1959, 0.0
  %v2317 = vadd.f32 %v2315, %v2316
  %v2318 = vsel %vm2006, %v1960, 0.0
  %v2319 = vadd.f32 %v2317, %v2318
  %v2320 = vsel %vm2006, %v1961, 0.0
  %v2321 = vadd.f32 %v2319, %v2320
  %v2322 = vsel %vm2006, %v1962, 0.0
  %v2323 = vadd.f32 %v2321, %v2322
  %v2324 = vsel %vm2006, %v1963, 0.0
  %v2325 = vadd.f32 %v2323, %v2324
  %v2326 = vsel %vm2006, %v1964, 0.0
  %v2327 = vadd.f32 %v2325, %v2326
  %v2328 = vsel %vm2006, %v1965, 0.0
  %v2329 = vadd.f32 %v2327, %v2328
  %v2330 = vsel %vm2006, %v1966, 0.0
  %v2331 = vadd.f32 %v2329, %v2330
  %v2332 = vsel %vm2006, %v1967, 0.0
  %v2333 = vadd.f32 %v2331, %v2332
  %v2334 = vsel %vm2006, %v1968, 0.0
  %v2335 = vadd.f32 %v2333, %v2334
  %v2336 = vsel %vm2006, %v1969, 0.0
  %v2337 = vadd.f32 %v2335, %v2336
  %v2338 = vsel %vm2006, %v1970, 0.0
  %v2339 = vadd.f32 %v2337, %v2338
  %v2340 = vsel %vm2006, %v1971, 0.0
  %v2341 = vadd.f32 %v2339, %v2340
  %v2342 = vsel %vm2006, %v1972, 0.0
  %v2343 = vadd.f32 %v2341, %v2342
  %v2344 = vsel %vm2006, %v1973, 0.0
  %v2345 = vadd.f32 %v2343, %v2344
  %v2346 = vrot.slane %v2345, 4
  %v2347 = vadd.f32 %v2345, %v2346
  %v2348 = vrot.slane %v2347, 2
  %v2349 = vadd.f32 %v2347, %v2348
  %v2350 = vrot.slane %v2349, 1
  %v2351 = vadd.f32 %v2349, %v2350
  %v2352 = vsel %vm2006, %v1974, 0.0
  %v2353 = vsel %vm2006, %v1975, 0.0
  %v2354 = vadd.f32 %v2352, %v2353
  %v2355 = vsel %vm2006, %v1976, 0.0
  %v2356 = vadd.f32 %v2354, %v2355
  %v2357 = vsel %vm2006, %v1977, 0.0
  %v2358 = vadd.f32 %v2356, %v2357
  %v2359 = vsel %vm2006, %v1978, 0.0
  %v2360 = vadd.f32 %v2358, %v2359
  %v2361 = vsel %vm2006, %v1979, 0.0
  %v2362 = vadd.f32 %v2360, %v2361
  %v2363 = vsel %vm2006, %v1980, 0.0
  %v2364 = vadd.f32 %v2362, %v2363
  %v2365 = vsel %vm2006, %v1981, 0.0
  %v2366 = vadd.f32 %v2364, %v2365
  %v2367 = vsel %vm2006, %v1982, 0.0
  %v2368 = vadd.f32 %v2366, %v2367
  %v2369 = vsel %vm2006, %v1983, 0.0
  %v2370 = vadd.f32 %v2368, %v2369
  %v2371 = vsel %vm2006, %v1984, 0.0
  %v2372 = vadd.f32 %v2370, %v2371
  %v2373 = vsel %vm2006, %v1985, 0.0
  %v2374 = vadd.f32 %v2372, %v2373
  %v2375 = vsel %vm2006, %v1986, 0.0
  %v2376 = vadd.f32 %v2374, %v2375
  %v2377 = vsel %vm2006, %v1987, 0.0
  %v2378 = vadd.f32 %v2376, %v2377
  %v2379 = vsel %vm2006, %v1988, 0.0
  %v2380 = vadd.f32 %v2378, %v2379
  %v2381 = vsel %vm2006, %v1989, 0.0
  %v2382 = vadd.f32 %v2380, %v2381
  %v2383 = vsel %vm2006, %v1990, 0.0
  %v2384 = vadd.f32 %v2382, %v2383
  %v2385 = vsel %vm2006, %v1991, 0.0
  %v2386 = vadd.f32 %v2384, %v2385
  %v2387 = vsel %vm2006, %v1992, 0.0
  %v2388 = vadd.f32 %v2386, %v2387
  %v2389 = vsel %vm2006, %v1993, 0.0
  %v2390 = vadd.f32 %v2388, %v2389
  %v2391 = vsel %vm2006, %v1994, 0.0
  %v2392 = vadd.f32 %v2390, %v2391
  %v2393 = vsel %vm2006, %v1995, 0.0
  %v2394 = vadd.f32 %v2392, %v2393
  %v2395 = vsel %vm2006, %v1996, 0.0
  %v2396 = vadd.f32 %v2394, %v2395
  %v2397 = vsel %vm2006, %v1997, 0.0
  %v2398 = vadd.f32 %v2396, %v2397
  %v2399 = vsel %vm2006, %v1998, 0.0
  %v2400 = vadd.f32 %v2398, %v2399
  %v2401 = vsel %vm2006, %v1999, 0.0
  %v2402 = vadd.f32 %v2400, %v2401
  %v2403 = vsel %vm2006, %v2000, 0.0
  %v2404 = vadd.f32 %v2402, %v2403
  %v2405 = vsel %vm2006, %v2001, 0.0
  %v2406 = vadd.f32 %v2404, %v2405
  %v2407 = vsel %vm2006, %v2002, 0.0
  %v2408 = vadd.f32 %v2406, %v2407
  %v2409 = vsel %vm2006, %v2003, 0.0
  %v2410 = vadd.f32 %v2408, %v2409
  %v2411 = vsel %vm2006, %v2004, 0.0
  %v2412 = vadd.f32 %v2410, %v2411
  %v2413 = vsel %vm2006, %v2005, 0.0
  %v2414 = vadd.f32 %v2412, %v2413
  %v2415 = vrot.slane %v2414, 4
  %v2416 = vadd.f32 %v2414, %v2415
  %v2417 = vrot.slane %v2416, 2
  %v2418 = vadd.f32 %v2416, %v2417
  %v2419 = vrot.slane %v2418, 1
  %v2420 = vadd.f32 %v2418, %v2419
  %v2421 = vld [vmem:[%s3] sm:$0xff]
  %v2422 = vld [vmem:[%s3 + $0x8] sm:$0xff]
  %v2423 = vld [vmem:[%s3 + $0x10] sm:$0xff]
  %v2424 = vld [vmem:[%s3 + $0x18] sm:$0xff]
  %v2425 = vld [vmem:[%s4] sm:$0x1]
  %v2427 = vlaneseq
  %v2428 = vshrl.u32 %v2427, 7
  %v2429 = vsub.s32 0, %v2428
  %v2430 = vrot.slane %v2425, %v2429
  %vm2438 = vcmask 1041409
  %v2439 = vsel %vm2438, %v2144, %v2075
  %vm2440 = vcmask 1042434
  %v2441 = vsel %vm2440, %v2213, %v2439
  %vm2442 = vcmask 1043459
  %v2443 = vsel %vm2442, %v2282, %v2441
  %vm2444 = vcmask 1044484
  %v2445 = vsel %vm2444, %v2351, %v2443
  %vm2446 = vcmask 1045509
  %v2447 = vsel %vm2446, %v2420, %v2445
  %v2448 = vsel %vm2006, %v2447, 0
  %2450 = vmatprep.subr.mxu0 0.0
  %2451 = vmatpush1.msra.mxu0 0.0
  %2452 = vmatprep.subr.mxu0 0.0
  %2453 = vmatpush1.msra.mxu0 0.0
  %2454 = vmatprep.subr.mxu0 0.0
  %2455 = vmatpush1.msra.mxu0 0.0
  %2456 = vmatprep.subr.mxu0 0.0
  %2457 = vmatpush1.msra.mxu0 0.0
  %2458 = vmatprep.subr.mxu0 0.0
  %2459 = vmatpush1.msra.mxu0 0.0
  %2460 = vmatprep.subr.mxu0 0.0
  %2461 = vmatpush1.msra.mxu0 0.0
  %2462 = vmatprep.subr.mxu0 0.0
  %2463 = vmatpush1.msra.mxu0 0.0
  %2464 = vmatprep.subr.mxu0 0.0
  %2465 = vmatpush1.msra.mxu0 0.0
  %2466 = vmatprep.subr.mxu0 0.0
  %2467 = vmatpush1.msra.mxu0 0.0
  %2468 = vmatprep.subr.mxu0 0.0
  %2469 = vmatpush1.msra.mxu0 0.0
  %2470 = vmatprep.subr.mxu0 0.0
  %2471 = vmatpush1.msra.mxu0 0.0
  %2472 = vmatprep.subr.mxu0 0.0
  %2473 = vmatpush1.msra.mxu0 0.0
  %2474 = vmatprep.subr.mxu0 0.0
  %2475 = vmatpush1.msra.mxu0 %v2424
  %2476 = vmatprep.subr.mxu0 0.0
  %2477 = vmatpush1.msra.mxu0 %v2423
  %2478 = vmatprep.subr.mxu0 0.0
  %2479 = vmatpush1.msra.mxu0 %v2422
  %2480 = vmatprep.subr.mxu0 0.0
  %2481 = vmatpush1.msra.mxu0 %v2421
  %2482 = vmatprep.subr.mxu0 0.0
  %2483 = vmatpush2.msra.mxu0 0.0
  %2484 = vmatprep.subr.mxu0 0.0
  %2485 = vmatpush2.msra.mxu0 0.0
  %2486 = vmatprep.subr.mxu0 0.0
  %2487 = vmatpush2.msra.mxu0 0.0
  %2488 = vmatprep.subr.mxu0 0.0
  %2489 = vmatpush2.msra.mxu0 0.0
  %2490 = vmatprep.subr.mxu0 0.0
  %2491 = vmatpush2.msra.mxu0 0.0
  %2492 = vmatprep.subr.mxu0 0.0
  %2493 = vmatpush2.msra.mxu0 0.0
  %2494 = vmatprep.subr.mxu0 0.0
  %2495 = vmatpush2.msra.mxu0 0.0
  %2496 = vmatprep.subr.mxu0 0.0
  %2497 = vmatpush2.msra.mxu0 0.0
  %2498 = vmatprep.subr.mxu0 0.0
  %2499 = vmatpush2.msra.mxu0 0.0
  %2500 = vmatprep.subr.mxu0 0.0
  %2501 = vmatpush2.msra.mxu0 0.0
  %2502 = vmatprep.subr.mxu0 0.0
  %2503 = vmatpush2.msra.mxu0 0.0
  %2504 = vmatprep.subr.mxu0 0.0
  %2505 = vmatpush2.msra.mxu0 0.0
  %2506 = vmatprep.subr.mxu0 0.0
  %2507 = vmatpush2.msra.mxu0 0.0
  %2508 = vmatprep.subr.mxu0 0.0
  %2509 = vmatpush2.msra.mxu0 0.0
  %2510 = vmatprep.subr.mxu0 0.0
  %2511 = vmatpush2.msra.mxu0 0.0
  %2512 = vmatprep.subr.mxu0 0.0
  %2513 = vmatpush2.msra.mxu0 0.0
  %2514 = vmatprep.mubr.f32.mxu0 0.0
  %2515 = vmatmul.mubr.f32.gmra.mxu0 %v2448
  %v2516 = vpop.f32.mrf.mxu0
  %v2517 = vadd.f32 %v2430, %v2516
  %v2518 = vpop.f32.mrf.mxu0
  %2519 = vdwg.mxu0
  %vm2520 = vcmask 128000
  %2521 = vst.msk [vmem:[%s5] sm:$0x3f] %vm2520, %v2517
  // Predicated region
  $region22: #{triplet_net_forward.1} parent=0 // pred_check
    _
  $region23: #{triplet_net_forward.1} parent=0 // pred_check_branch
    %2523 = sbr.rel (0) target = $region25
  $region24: #{triplet_net_forward.1} parent=0 // pred_region
    _
  $region25: #{triplet_net_forward.1} parent=0 // pred_fallthru
    _
  // Predicated region
  $region26: #{triplet_net_forward.1} parent=0 // pred_check
    _
  $region27: #{triplet_net_forward.1} parent=0 // pred_check_branch
    %2525 = sbr.rel (0) target = $region29
  $region28: #{triplet_net_forward.1} parent=0 // pred_region
    _
  $region29: #{triplet_net_forward.1} parent=0 // pred_fallthru
    _

</llo_original>
